<compile_context>
chip_gen: v6e
topology: v6e:2x2x1
jax: 0.10.0
libtpu: 0.0.40
codegen_flags: <defaults>
</compile_context>

<pallas_src>
import functools

import jax
import jax.numpy as jnp
from jax import lax
from jax.experimental import pallas as pl
from jax.experimental.pallas import tpu as pltpu

NUM_BLOCKS = 9          # 8 blocks in `layer` + 1 block in `layer_out`
NUM_PARAMS = 7          # [w1, gamma1, beta1, w2, b2, gamma2, beta2]
BN_EPS = 1e-5
LANES = 128
SUBLANES = 8
TILE = SUBLANES * LANES     # pad B*L up to a multiple of 1024 -> rows % 8 == 0
CHUNK = 8                   # rows per reduction strip: one (8,128) f32 vreg


def _smoother_kernel(params_ref, x_ref, o_ref, r_ref, *, n_valid, pad_count):
    """params_ref: SMEM (63,) f32.  x_ref/o_ref/r_ref: VMEM (rows, 128) f32.

    o_ref doubles as the running `cur` slab (blocks >= 1 write into it); r_ref holds
    the previous block's relu activation so the residual update of block k fuses with
    the pre-activation pass of block k+1.
    """
    rows = o_ref.shape[0]
    n_chunks = rows // CHUNK
    inv_n = jnp.float32(1.0 / n_valid)
    nval = jnp.float32(n_valid)
    npad = jnp.float32(pad_count)
    zero_acc = jnp.zeros((CHUNK, LANES), jnp.float32)

    # ---- Pass 0: batch stats of the input (pad lanes are zero -> no correction).
    def stats_body(i, carry):
        acc_s, acc_ss = carry
        off = pl.multiple_of(i * CHUNK, CHUNK)
        v = x_ref[pl.ds(off, CHUNK), :]
        return acc_s + v, acc_ss + v * v

    acc_s, acc_ss = lax.fori_loop(0, n_chunks, stats_body, (zero_acc, zero_acc))
    s = jnp.sum(acc_s)
    ss = jnp.sum(acc_ss)

    # Residual affine of the previous block (identity before block 0).
    c_prev = jnp.float32(0.0)
    d_prev = jnp.float32(0.0)
    # Scalar tracking of the (zero-initialized) pad lanes.
    p_pad = jnp.float32(0.0)
    rpad_prev = jnp.float32(0.0)

    for blk in range(NUM_BLOCKS):
        base = blk * NUM_PARAMS
        w1 = params_ref[base + 0]
        g1 = params_ref[base + 1]
        b1 = params_ref[base + 2]
        w2 = params_ref[base + 3]
        # params_ref[base + 4] (convT bias) cancels inside bn2 -> not needed.
        g2 = params_ref[base + 5]
        bb2 = params_ref[base + 6]

        # Fold conv1 (scalar w1) into bn1:  bn1(w1*x) = A*x + B  (batch stats s, ss).
        m_c = s * inv_n
        v_c = jnp.maximum(ss * inv_n - m_c * m_c, 0.0)
        a_coef = g1 * w1 * lax.rsqrt(w1 * w1 * v_c + BN_EPS)
        b_coef = b1 - a_coef * m_c

        first = (blk == 0)          # block 0: no previous residual to apply
        from_x = (blk <= 1)         # blocks 0 & 1 still read `cur` from the input slab

        # Fused traversal: apply previous block's residual (write `new` to o_ref),
        # compute this block's relu pre-activation (write to r_ref), and accumulate
        # partial sums of r, r^2 and new*r in (8,128) vreg accumulators.
        def blk_body(i, carry, *, a=a_coef, b=b_coef, c_k=c_prev, d_k=d_prev,
                     first=first, from_x=from_x):
            acc_r, acc_rr, acc_cr = carry
            off = pl.multiple_of(i * CHUNK, CHUNK)
            if from_x:
                cur = x_ref[pl.ds(off, CHUNK), :]
            else:
                cur = o_ref[pl.ds(off, CHUNK), :]
            if first:
                new = cur
            else:
                new = cur + c_k * r_ref[pl.ds(off, CHUNK), :] + d_k
                o_ref[pl.ds(off, CHUNK), :] = new
            r = jnp.maximum(a * new + b, 0.0)
            r_ref[pl.ds(off, CHUNK), :] = r
            return acc_r + r, acc_rr + r * r, acc_cr + new * r

        acc_r, acc_rr, acc_cr = lax.fori_loop(
            0, n_chunks, blk_body, (zero_acc, zero_acc, zero_acc))
        sr = jnp.sum(acc_r)
        ssr = jnp.sum(acc_rr)
        scr = jnp.sum(acc_cr)

        # Remove the pad-lane contribution analytically (scalar-only cost).
        if pad_count > 0:
            if blk > 0:
                p_pad = p_pad + c_prev * rpad_prev + d_prev
            rpad = jnp.maximum(a_coef * p_pad + b_coef, 0.0)
            sr = sr - npad * rpad
            ssr = ssr - npad * rpad * rpad
            scr = scr - npad * p_pad * rpad
            rpad_prev = rpad

        # Fold conv_transpose (scalar w2) into bn2:  bn2(w2*r + bias) = C*r + D.
        m_r = sr * inv_n
        v_r = jnp.maximum(ssr * inv_n - m_r * m_r, 0.0)
        c_coef = g2 * w2 * lax.rsqrt(w2 * w2 * v_r + BN_EPS)
        d_coef = bb2 - c_coef * m_r

        # Next block's batch stats, analytically (no extra slab traversal).
        s_next = s + c_coef * sr + nval * d_coef
        ss_next = (ss + c_coef * c_coef * ssr + nval * d_coef * d_coef
                   + 2.0 * c_coef * scr + 2.0 * d_coef * s
                   + 2.0 * c_coef * d_coef * sr)
        s, ss = s_next, ss_next
        c_prev, d_prev = c_coef, d_coef

    # ---- Final pass: last residual + sigmoid (single tanh transcendental).
    def out_body(i, carry, *, c_k=c_prev, d_k=d_prev):
        off = pl.multiple_of(i * CHUNK, CHUNK)
        z = o_ref[pl.ds(off, CHUNK), :] + c_k * r_ref[pl.ds(off, CHUNK), :] + d_k
        o_ref[pl.ds(off, CHUNK), :] = 0.5 * jnp.tanh(0.5 * z) + 0.5
        return carry

    lax.fori_loop(0, n_chunks, out_body, jnp.float32(0.0))


def ancestry_level_conv_smoother_(x, params):
    """x: (B, 1, L) float32 (NCL).  params: (9, 7) float32.  Returns (B, 1, L)."""
    B, C, L = x.shape
    assert C == 1, "model is built with 1 channel"
    n = B * L

    # Lane-dense layout: flatten to (rows, 128) with rows a multiple of 8; pad lanes
    # (zero-filled) are handled analytically in the kernel, no per-element mask.
    n_pad = ((n + TILE - 1) // TILE) * TILE
    pad_count = n_pad - n
    flat = x.reshape(n).astype(jnp.float32)
    if pad_count:
        flat = jnp.pad(flat, (0, pad_count))
    rows = n_pad // LANES
    assert rows % CHUNK == 0
    x2 = flat.reshape(rows, LANES)

    params_flat = params.reshape(NUM_BLOCKS * NUM_PARAMS).astype(jnp.float32)

    # Working set: input slab + output/cur slab + r scratch slab (+ headroom).
    slab_bytes = rows * LANES * 4
    needed = 3 * slab_bytes + (2 << 20)
    try:
        vmem_cap = int(getattr(pltpu.get_tpu_info(), "vmem_capacity_bytes", 64 << 20))
    except Exception:  # pragma: no cover - conservative fallback
        vmem_cap = 64 << 20
    vmem_ceiling = max(vmem_cap - (16 << 20), 16 << 20)   # leave DMA/scratch headroom
    vmem_limit = int(min(max(needed, 4 << 20), vmem_ceiling))
    if needed > vmem_limit:
        # TODO(synk): tiled-grid fallback with grid-carried stat accumulators.
        raise ValueError("input slab too large for the VMEM-resident design")

    kern = functools.partial(_smoother_kernel, n_valid=n, pad_count=pad_count)

    out = pl.pallas_call(
        kern,
        out_shape=jax.ShapeDtypeStruct((rows, LANES), jnp.float32),
        in_specs=[
            pl.BlockSpec(memory_space=pltpu.MemorySpace.SMEM),   # params (scalars)
            pl.BlockSpec(memory_space=pltpu.MemorySpace.VMEM),   # full input slab
        ],
        out_specs=pl.BlockSpec(memory_space=pltpu.MemorySpace.VMEM),
        scratch_shapes=[pltpu.VMEM((rows, LANES), jnp.float32)],  # r (prev relu)
        compiler_params=pltpu.CompilerParams(vmem_limit_bytes=vmem_limit),
    )(params_flat, x2)

    out_flat = out.reshape(n_pad)
    if pad_count:
        out_flat = out_flat[:n]
    return out_flat.reshape(B, 1, L)


def make_params(key):
    """Deterministic synthetic parameters (PyTorch-default-ish):
       conv weights/bias uniform(-1,1) (fan_in=1), BN gamma=1, beta=0."""
    kw1, kw2, kb2 = jax.random.split(key, 3)
    w1 = jax.random.uniform(kw1, (NUM_BLOCKS,), minval=-1.0, maxval=1.0)   # conv1 weight
    w2 = jax.random.uniform(kw2, (NUM_BLOCKS,), minval=-1.0, maxval=1.0)   # convT weight
    b2 = jax.random.uniform(kb2, (NUM_BLOCKS,), minval=-1.0, maxval=1.0)   # convT bias
    g1 = jnp.ones((NUM_BLOCKS,)); be1 = jnp.zeros((NUM_BLOCKS,))           # bn1 gamma/beta
    g2 = jnp.ones((NUM_BLOCKS,)); be2 = jnp.zeros((NUM_BLOCKS,))           # bn2 gamma/beta
    params = jnp.stack([w1, g1, be1, w2, b2, g2, be2], axis=1)             # (9, 7)
    return params.astype(jnp.float32)


def reference_forward(x, params):
    """Pure-JAX reference with the literal PyTorch (two-pass BN) math."""
    B, C, L = x.shape
    cur = x.reshape(B, L).astype(jnp.float32)
    for blk in range(NUM_BLOCKS):
        w1, g1, b1, w2, cb2, g2, bb2 = [params[blk, i] for i in range(NUM_PARAMS)]
        y1 = w1 * cur
        m1 = jnp.mean(y1); v1 = jnp.mean((y1 - m1) ** 2)
        z1 = g1 * (y1 - m1) / jnp.sqrt(v1 + BN_EPS) + b1
        r = jnp.maximum(z1, 0.0)
        y2 = w2 * r + cb2
        m2 = jnp.mean(y2); v2 = jnp.mean((y2 - m2) ** 2)
        z2 = g2 * (y2 - m2) / jnp.sqrt(v2 + BN_EPS) + bb2
        cur = cur + z2
    return jax.nn.sigmoid(cur).reshape(B, 1, L)


if __name__ == "__main__":
    key = jax.random.PRNGKey(0)
    kx, kx2, kp = jax.random.split(key, 3)
    params = make_params(kp)

    # Shape 1: B*L is a multiple of 1024 -> no padding, fully unmasked path.
    B, L = 4, 256
    x = jax.random.normal(kx, (B, 1, L), dtype=jnp.float32)
    out = jax.block_until_ready(ancestry_level_conv_smoother_(x, params))
    ref = reference_forward(x, params)
    assert out.shape == (B, 1, L)
    assert jnp.allclose(out, ref, atol=2e-3, rtol=2e-3), "mismatch vs JAX reference"

    # Shape 2: ragged B*L -> exercises the analytic pad-tracking path.
    B2, L2 = 2, 200
    x2 = jax.random.normal(kx2, (B2, 1, L2), dtype=jnp.float32)
    out2 = jax.block_until_ready(ancestry_level_conv_smoother_(x2, params))
    ref2 = reference_forward(x2, params)
    assert out2.shape == (B2, 1, L2)
    assert jnp.allclose(out2, ref2, atol=2e-3, rtol=2e-3), "mismatch (padded path)"

    print("KERNEL_OK")
</pallas_src>

<mosaic_0001>
module attributes {stable_mosaic.version = 11 : i64} {
  func.func @_smoother_kernel(%arg0: memref<63xf32, #tpu.memory_space<smem>>, %arg1: memref<8x128xf32, #tpu.memory_space<vmem>>, %arg2: memref<8x128xf32, #tpu.memory_space<vmem>>, %arg3: memref<8x128xf32, #tpu.memory_space<vmem>>) attributes {dimension_semantics = [], scalar_prefetch = 0 : i64, scratch_operands = 1 : i64, tpu.core_type = #tpu.core_type<tc>} {
    %cst = arith.constant 0.000000e+00 : f32
    %0 = vector.broadcast %cst : f32 to vector<8x128xf32>
    %c0_i32 = arith.constant 0 : i32
    %c8_i32 = arith.constant 8 : i32
    %1 = arith.muli %c0_i32, %c8_i32 : i32
    %2 = tpu.assume_multiple %1, 8 : i32
    %3 = arith.index_cast %2 : i32 to index
    %c0 = arith.constant 0 : index
    %4 = vector.load %arg1[%3, %c0] : memref<8x128xf32, #tpu.memory_space<vmem>>, vector<8x128xf32>
    %5 = arith.addf %0, %4 : vector<8x128xf32>
    %6 = arith.mulf %4, %4 : vector<8x128xf32>
    %7 = arith.addf %0, %6 : vector<8x128xf32>
    %c1_i32 = arith.constant 1 : i32
    %8 = vector.shape_cast %5 : vector<8x128xf32> to vector<1x8x128xf32>
    %cst_0 = arith.constant dense<0.000000e+00> : vector<1xf32>
    %9 = vector.multi_reduction <add>, %8, %cst_0 [1, 2] : vector<1x8x128xf32> to vector<1xf32>
    %10 = vector.shape_cast %9 : vector<1xf32> to vector<1x1x1xf32>
    %11 = vector.extract %10[0, 0, 0] : f32 from vector<1x1x1xf32>
    %12 = vector.shape_cast %7 : vector<8x128xf32> to vector<1x8x128xf32>
    %cst_1 = arith.constant dense<0.000000e+00> : vector<1xf32>
    %13 = vector.multi_reduction <add>, %12, %cst_1 [1, 2] : vector<1x8x128xf32> to vector<1xf32>
    %14 = vector.shape_cast %13 : vector<1xf32> to vector<1x1x1xf32>
    %15 = vector.extract %14[0, 0, 0] : f32 from vector<1x1x1xf32>
    %c0_2 = arith.constant 0 : index
    %16 = memref.load %arg0[%c0_2] : memref<63xf32, #tpu.memory_space<smem>>
    %c1 = arith.constant 1 : index
    %17 = memref.load %arg0[%c1] : memref<63xf32, #tpu.memory_space<smem>>
    %c2 = arith.constant 2 : index
    %18 = memref.load %arg0[%c2] : memref<63xf32, #tpu.memory_space<smem>>
    %c3 = arith.constant 3 : index
    %19 = memref.load %arg0[%c3] : memref<63xf32, #tpu.memory_space<smem>>
    %c5 = arith.constant 5 : index
    %20 = memref.load %arg0[%c5] : memref<63xf32, #tpu.memory_space<smem>>
    %c6 = arith.constant 6 : index
    %21 = memref.load %arg0[%c6] : memref<63xf32, #tpu.memory_space<smem>>
    %cst_3 = arith.constant 9.765625E-4 : f32
    %22 = arith.mulf %11, %cst_3 : f32
    %cst_4 = arith.constant 9.765625E-4 : f32
    %23 = arith.mulf %15, %cst_4 : f32
    %24 = arith.mulf %22, %22 : f32
    %25 = arith.subf %23, %24 : f32
    %cst_5 = arith.constant 0.000000e+00 : f32
    %26 = arith.maximumf %25, %cst_5 : f32
    %27 = arith.mulf %17, %16 : f32
    %28 = arith.mulf %16, %16 : f32
    %29 = arith.mulf %28, %26 : f32
    %cst_6 = arith.constant 9.99999974E-6 : f32
    %30 = arith.addf %29, %cst_6 : f32
    %31 = math.rsqrt %30 : f32
    %32 = arith.mulf %27, %31 : f32
    %33 = arith.mulf %32, %22 : f32
    %34 = arith.subf %18, %33 : f32
    %c0_i32_7 = arith.constant 0 : i32
    %c8_i32_8 = arith.constant 8 : i32
    %35 = arith.muli %c0_i32_7, %c8_i32_8 : i32
    %36 = tpu.assume_multiple %35, 8 : i32
    %37 = arith.index_cast %36 : i32 to index
    %c0_9 = arith.constant 0 : index
    %38 = vector.load %arg1[%37, %c0_9] : memref<8x128xf32, #tpu.memory_space<vmem>>, vector<8x128xf32>
    %39 = vector.broadcast %32 : f32 to vector<8x128xf32>
    %40 = arith.mulf %39, %38 : vector<8x128xf32>
    %41 = vector.broadcast %34 : f32 to vector<8x128xf32>
    %42 = arith.addf %40, %41 : vector<8x128xf32>
    %cst_10 = arith.constant 0.000000e+00 : f32
    %43 = vector.broadcast %cst_10 : f32 to vector<8x128xf32>
    %44 = arith.maximumf %42, %43 : vector<8x128xf32>
    %45 = arith.index_cast %36 : i32 to index
    %c0_11 = arith.constant 0 : index
    %46 = vector.load %arg3[%45, %c0_11] : memref<8x128xf32, #tpu.memory_space<vmem>>, vector<8x128xf32>
    tpu.vector_store %arg3[%45, %c0_11], %44 {strides = array<i32>} : memref<8x128xf32, #tpu.memory_space<vmem>>, vector<8x128xf32>,
    %47 = arith.addf %0, %44 : vector<8x128xf32>
    %48 = arith.mulf %44, %44 : vector<8x128xf32>
    %49 = arith.addf %0, %48 : vector<8x128xf32>
    %50 = arith.mulf %38, %44 : vector<8x128xf32>
    %51 = arith.addf %0, %50 : vector<8x128xf32>
    %c1_i32_12 = arith.constant 1 : i32
    %52 = vector.shape_cast %47 : vector<8x128xf32> to vector<1x8x128xf32>
    %cst_13 = arith.constant dense<0.000000e+00> : vector<1xf32>
    %53 = vector.multi_reduction <add>, %52, %cst_13 [1, 2] : vector<1x8x128xf32> to vector<1xf32>
    %54 = vector.shape_cast %53 : vector<1xf32> to vector<1x1x1xf32>
    %55 = vector.extract %54[0, 0, 0] : f32 from vector<1x1x1xf32>
    %56 = vector.shape_cast %49 : vector<8x128xf32> to vector<1x8x128xf32>
    %cst_14 = arith.constant dense<0.000000e+00> : vector<1xf32>
    %57 = vector.multi_reduction <add>, %56, %cst_14 [1, 2] : vector<1x8x128xf32> to vector<1xf32>
    %58 = vector.shape_cast %57 : vector<1xf32> to vector<1x1x1xf32>
    %59 = vector.extract %58[0, 0, 0] : f32 from vector<1x1x1xf32>
    %60 = vector.shape_cast %51 : vector<8x128xf32> to vector<1x8x128xf32>
    %cst_15 = arith.constant dense<0.000000e+00> : vector<1xf32>
    %61 = vector.multi_reduction <add>, %60, %cst_15 [1, 2] : vector<1x8x128xf32> to vector<1xf32>
    %62 = vector.shape_cast %61 : vector<1xf32> to vector<1x1x1xf32>
    %63 = vector.extract %62[0, 0, 0] : f32 from vector<1x1x1xf32>
    %cst_16 = arith.constant 9.765625E-4 : f32
    %64 = arith.mulf %55, %cst_16 : f32
    %cst_17 = arith.constant 9.765625E-4 : f32
    %65 = arith.mulf %59, %cst_17 : f32
    %66 = arith.mulf %64, %64 : f32
    %67 = arith.subf %65, %66 : f32
    %cst_18 = arith.constant 0.000000e+00 : f32
    %68 = arith.maximumf %67, %cst_18 : f32
    %69 = arith.mulf %20, %19 : f32
    %70 = arith.mulf %19, %19 : f32
    %71 = arith.mulf %70, %68 : f32
    %cst_19 = arith.constant 9.99999974E-6 : f32
    %72 = arith.addf %71, %cst_19 : f32
    %73 = math.rsqrt %72 : f32
    %74 = arith.mulf %69, %73 : f32
    %75 = arith.mulf %74, %64 : f32
    %76 = arith.subf %21, %75 : f32
    %77 = arith.mulf %74, %55 : f32
    %78 = arith.addf %11, %77 : f32
    %cst_20 = arith.constant 1.024000e+03 : f32
    %79 = arith.mulf %cst_20, %76 : f32
    %80 = arith.addf %78, %79 : f32
    %81 = arith.mulf %74, %74 : f32
    %82 = arith.mulf %81, %59 : f32
    %83 = arith.addf %15, %82 : f32
    %cst_21 = arith.constant 1.024000e+03 : f32
    %84 = arith.mulf %cst_21, %76 : f32
    %85 = arith.mulf %84, %76 : f32
    %86 = arith.addf %83, %85 : f32
    %cst_22 = arith.constant 2.000000e+00 : f32
    %87 = arith.mulf %cst_22, %74 : f32
    %88 = arith.mulf %87, %63 : f32
    %89 = arith.addf %86, %88 : f32
    %cst_23 = arith.constant 2.000000e+00 : f32
    %90 = arith.mulf %cst_23, %76 : f32
    %91 = arith.mulf %90, %11 : f32
    %92 = arith.addf %89, %91 : f32
    %cst_24 = arith.constant 2.000000e+00 : f32
    %93 = arith.mulf %cst_24, %74 : f32
    %94 = arith.mulf %93, %76 : f32
    %95 = arith.mulf %94, %55 : f32
    %96 = arith.addf %92, %95 : f32
    %c7 = arith.constant 7 : index
    %97 = memref.load %arg0[%c7] : memref<63xf32, #tpu.memory_space<smem>>
    %c8 = arith.constant 8 : index
    %98 = memref.load %arg0[%c8] : memref<63xf32, #tpu.memory_space<smem>>
    %c9 = arith.constant 9 : index
    %99 = memref.load %arg0[%c9] : memref<63xf32, #tpu.memory_space<smem>>
    %c10 = arith.constant 10 : index
    %100 = memref.load %arg0[%c10] : memref<63xf32, #tpu.memory_space<smem>>
    %c12 = arith.constant 12 : index
    %101 = memref.load %arg0[%c12] : memref<63xf32, #tpu.memory_space<smem>>
    %c13 = arith.constant 13 : index
    %102 = memref.load %arg0[%c13] : memref<63xf32, #tpu.memory_space<smem>>
    %cst_25 = arith.constant 9.765625E-4 : f32
    %103 = arith.mulf %80, %cst_25 : f32
    %cst_26 = arith.constant 9.765625E-4 : f32
    %104 = arith.mulf %96, %cst_26 : f32
    %105 = arith.mulf %103, %103 : f32
    %106 = arith.subf %104, %105 : f32
    %cst_27 = arith.constant 0.000000e+00 : f32
    %107 = arith.maximumf %106, %cst_27 : f32
    %108 = arith.mulf %98, %97 : f32
    %109 = arith.mulf %97, %97 : f32
    %110 = arith.mulf %109, %107 : f32
    %cst_28 = arith.constant 9.99999974E-6 : f32
    %111 = arith.addf %110, %cst_28 : f32
    %112 = math.rsqrt %111 : f32
    %113 = arith.mulf %108, %112 : f32
    %114 = arith.mulf %113, %103 : f32
    %115 = arith.subf %99, %114 : f32
    %c0_i32_29 = arith.constant 0 : i32
    %c8_i32_30 = arith.constant 8 : i32
    %116 = arith.muli %c0_i32_29, %c8_i32_30 : i32
    %117 = tpu.assume_multiple %116, 8 : i32
    %118 = arith.index_cast %117 : i32 to index
    %c0_31 = arith.constant 0 : index
    %119 = vector.load %arg1[%118, %c0_31] : memref<8x128xf32, #tpu.memory_space<vmem>>, vector<8x128xf32>
    %120 = arith.index_cast %117 : i32 to index
    %c0_32 = arith.constant 0 : index
    %121 = vector.load %arg3[%120, %c0_32] : memref<8x128xf32, #tpu.memory_space<vmem>>, vector<8x128xf32>
    %122 = vector.broadcast %74 : f32 to vector<8x128xf32>
    %123 = arith.mulf %122, %121 : vector<8x128xf32>
    %124 = arith.addf %119, %123 : vector<8x128xf32>
    %125 = vector.broadcast %76 : f32 to vector<8x128xf32>
    %126 = arith.addf %124, %125 : vector<8x128xf32>
    %127 = arith.index_cast %117 : i32 to index
    %c0_33 = arith.constant 0 : index
    %128 = vector.load %arg2[%127, %c0_33] : memref<8x128xf32, #tpu.memory_space<vmem>>, vector<8x128xf32>
    tpu.vector_store %arg2[%127, %c0_33], %126 {strides = array<i32>} : memref<8x128xf32, #tpu.memory_space<vmem>>, vector<8x128xf32>,
    %129 = vector.broadcast %113 : f32 to vector<8x128xf32>
    %130 = arith.mulf %129, %126 : vector<8x128xf32>
    %131 = vector.broadcast %115 : f32 to vector<8x128xf32>
    %132 = arith.addf %130, %131 : vector<8x128xf32>
    %cst_34 = arith.constant 0.000000e+00 : f32
    %133 = vector.broadcast %cst_34 : f32 to vector<8x128xf32>
    %134 = arith.maximumf %132, %133 : vector<8x128xf32>
    %135 = arith.index_cast %117 : i32 to index
    %c0_35 = arith.constant 0 : index
    %136 = vector.load %arg3[%135, %c0_35] : memref<8x128xf32, #tpu.memory_space<vmem>>, vector<8x128xf32>
    tpu.vector_store %arg3[%135, %c0_35], %134 {strides = array<i32>} : memref<8x128xf32, #tpu.memory_space<vmem>>, vector<8x128xf32>,
    %137 = arith.addf %0, %134 : vector<8x128xf32>
    %138 = arith.mulf %134, %134 : vector<8x128xf32>
    %139 = arith.addf %0, %138 : vector<8x128xf32>
    %140 = arith.mulf %126, %134 : vector<8x128xf32>
    %141 = arith.addf %0, %140 : vector<8x128xf32>
    %c1_i32_36 = arith.constant 1 : i32
    %142 = vector.shape_cast %137 : vector<8x128xf32> to vector<1x8x128xf32>
    %cst_37 = arith.constant dense<0.000000e+00> : vector<1xf32>
    %143 = vector.multi_reduction <add>, %142, %cst_37 [1, 2] : vector<1x8x128xf32> to vector<1xf32>
    %144 = vector.shape_cast %143 : vector<1xf32> to vector<1x1x1xf32>
    %145 = vector.extract %144[0, 0, 0] : f32 from vector<1x1x1xf32>
    %146 = vector.shape_cast %139 : vector<8x128xf32> to vector<1x8x128xf32>
    %cst_38 = arith.constant dense<0.000000e+00> : vector<1xf32>
    %147 = vector.multi_reduction <add>, %146, %cst_38 [1, 2] : vector<1x8x128xf32> to vector<1xf32>
    %148 = vector.shape_cast %147 : vector<1xf32> to vector<1x1x1xf32>
    %149 = vector.extract %148[0, 0, 0] : f32 from vector<1x1x1xf32>
    %150 = vector.shape_cast %141 : vector<8x128xf32> to vector<1x8x128xf32>
    %cst_39 = arith.constant dense<0.000000e+00> : vector<1xf32>
    %151 = vector.multi_reduction <add>, %150, %cst_39 [1, 2] : vector<1x8x128xf32> to vector<1xf32>
    %152 = vector.shape_cast %151 : vector<1xf32> to vector<1x1x1xf32>
    %153 = vector.extract %152[0, 0, 0] : f32 from vector<1x1x1xf32>
    %cst_40 = arith.constant 9.765625E-4 : f32
    %154 = arith.mulf %145, %cst_40 : f32
    %cst_41 = arith.constant 9.765625E-4 : f32
    %155 = arith.mulf %149, %cst_41 : f32
    %156 = arith.mulf %154, %154 : f32
    %157 = arith.subf %155, %156 : f32
    %cst_42 = arith.constant 0.000000e+00 : f32
    %158 = arith.maximumf %157, %cst_42 : f32
    %159 = arith.mulf %101, %100 : f32
    %160 = arith.mulf %100, %100 : f32
    %161 = arith.mulf %160, %158 : f32
    %cst_43 = arith.constant 9.99999974E-6 : f32
    %162 = arith.addf %161, %cst_43 : f32
    %163 = math.rsqrt %162 : f32
    %164 = arith.mulf %159, %163 : f32
    %165 = arith.mulf %164, %154 : f32
    %166 = arith.subf %102, %165 : f32
    %167 = arith.mulf %164, %145 : f32
    %168 = arith.addf %80, %167 : f32
    %cst_44 = arith.constant 1.024000e+03 : f32
    %169 = arith.mulf %cst_44, %166 : f32
    %170 = arith.addf %168, %169 : f32
    %171 = arith.mulf %164, %164 : f32
    %172 = arith.mulf %171, %149 : f32
    %173 = arith.addf %96, %172 : f32
    %cst_45 = arith.constant 1.024000e+03 : f32
    %174 = arith.mulf %cst_45, %166 : f32
    %175 = arith.mulf %174, %166 : f32
    %176 = arith.addf %173, %175 : f32
    %cst_46 = arith.constant 2.000000e+00 : f32
    %177 = arith.mulf %cst_46, %164 : f32
    %178 = arith.mulf %177, %153 : f32
    %179 = arith.addf %176, %178 : f32
    %cst_47 = arith.constant 2.000000e+00 : f32
    %180 = arith.mulf %cst_47, %166 : f32
    %181 = arith.mulf %180, %80 : f32
    %182 = arith.addf %179, %181 : f32
    %cst_48 = arith.constant 2.000000e+00 : f32
    %183 = arith.mulf %cst_48, %164 : f32
    %184 = arith.mulf %183, %166 : f32
    %185 = arith.mulf %184, %145 : f32
    %186 = arith.addf %182, %185 : f32
    %c14 = arith.constant 14 : index
    %187 = memref.load %arg0[%c14] : memref<63xf32, #tpu.memory_space<smem>>
    %c15 = arith.constant 15 : index
    %188 = memref.load %arg0[%c15] : memref<63xf32, #tpu.memory_space<smem>>
    %c16 = arith.constant 16 : index
    %189 = memref.load %arg0[%c16] : memref<63xf32, #tpu.memory_space<smem>>
    %c17 = arith.constant 17 : index
    %190 = memref.load %arg0[%c17] : memref<63xf32, #tpu.memory_space<smem>>
    %c19 = arith.constant 19 : index
    %191 = memref.load %arg0[%c19] : memref<63xf32, #tpu.memory_space<smem>>
    %c20 = arith.constant 20 : index
    %192 = memref.load %arg0[%c20] : memref<63xf32, #tpu.memory_space<smem>>
    %cst_49 = arith.constant 9.765625E-4 : f32
    %193 = arith.mulf %170, %cst_49 : f32
    %cst_50 = arith.constant 9.765625E-4 : f32
    %194 = arith.mulf %186, %cst_50 : f32
    %195 = arith.mulf %193, %193 : f32
    %196 = arith.subf %194, %195 : f32
    %cst_51 = arith.constant 0.000000e+00 : f32
    %197 = arith.maximumf %196, %cst_51 : f32
    %198 = arith.mulf %188, %187 : f32
    %199 = arith.mulf %187, %187 : f32
    %200 = arith.mulf %199, %197 : f32
    %cst_52 = arith.constant 9.99999974E-6 : f32
    %201 = arith.addf %200, %cst_52 : f32
    %202 = math.rsqrt %201 : f32
    %203 = arith.mulf %198, %202 : f32
    %204 = arith.mulf %203, %193 : f32
    %205 = arith.subf %189, %204 : f32
    %c0_i32_53 = arith.constant 0 : i32
    %c8_i32_54 = arith.constant 8 : i32
    %206 = arith.muli %c0_i32_53, %c8_i32_54 : i32
    %207 = tpu.assume_multiple %206, 8 : i32
    %208 = arith.index_cast %207 : i32 to index
    %c0_55 = arith.constant 0 : index
    %209 = vector.load %arg2[%208, %c0_55] : memref<8x128xf32, #tpu.memory_space<vmem>>, vector<8x128xf32>
    %210 = arith.index_cast %207 : i32 to index
    %c0_56 = arith.constant 0 : index
    %211 = vector.load %arg3[%210, %c0_56] : memref<8x128xf32, #tpu.memory_space<vmem>>, vector<8x128xf32>
    %212 = vector.broadcast %164 : f32 to vector<8x128xf32>
    %213 = arith.mulf %212, %211 : vector<8x128xf32>
    %214 = arith.addf %209, %213 : vector<8x128xf32>
    %215 = vector.broadcast %166 : f32 to vector<8x128xf32>
    %216 = arith.addf %214, %215 : vector<8x128xf32>
    %217 = arith.index_cast %207 : i32 to index
    %c0_57 = arith.constant 0 : index
    %218 = vector.load %arg2[%217, %c0_57] : memref<8x128xf32, #tpu.memory_space<vmem>>, vector<8x128xf32>
    tpu.vector_store %arg2[%217, %c0_57], %216 {strides = array<i32>} : memref<8x128xf32, #tpu.memory_space<vmem>>, vector<8x128xf32>,
    %219 = vector.broadcast %203 : f32 to vector<8x128xf32>
    %220 = arith.mulf %219, %216 : vector<8x128xf32>
    %221 = vector.broadcast %205 : f32 to vector<8x128xf32>
    %222 = arith.addf %220, %221 : vector<8x128xf32>
    %cst_58 = arith.constant 0.000000e+00 : f32
    %223 = vector.broadcast %cst_58 : f32 to vector<8x128xf32>
    %224 = arith.maximumf %222, %223 : vector<8x128xf32>
    %225 = arith.index_cast %207 : i32 to index
    %c0_59 = arith.constant 0 : index
    %226 = vector.load %arg3[%225, %c0_59] : memref<8x128xf32, #tpu.memory_space<vmem>>, vector<8x128xf32>
    tpu.vector_store %arg3[%225, %c0_59], %224 {strides = array<i32>} : memref<8x128xf32, #tpu.memory_space<vmem>>, vector<8x128xf32>,
    %227 = arith.addf %0, %224 : vector<8x128xf32>
    %228 = arith.mulf %224, %224 : vector<8x128xf32>
    %229 = arith.addf %0, %228 : vector<8x128xf32>
    %230 = arith.mulf %216, %224 : vector<8x128xf32>
    %231 = arith.addf %0, %230 : vector<8x128xf32>
    %c1_i32_60 = arith.constant 1 : i32
    %232 = vector.shape_cast %227 : vector<8x128xf32> to vector<1x8x128xf32>
    %cst_61 = arith.constant dense<0.000000e+00> : vector<1xf32>
    %233 = vector.multi_reduction <add>, %232, %cst_61 [1, 2] : vector<1x8x128xf32> to vector<1xf32>
    %234 = vector.shape_cast %233 : vector<1xf32> to vector<1x1x1xf32>
    %235 = vector.extract %234[0, 0, 0] : f32 from vector<1x1x1xf32>
    %236 = vector.shape_cast %229 : vector<8x128xf32> to vector<1x8x128xf32>
    %cst_62 = arith.constant dense<0.000000e+00> : vector<1xf32>
    %237 = vector.multi_reduction <add>, %236, %cst_62 [1, 2] : vector<1x8x128xf32> to vector<1xf32>
    %238 = vector.shape_cast %237 : vector<1xf32> to vector<1x1x1xf32>
    %239 = vector.extract %238[0, 0, 0] : f32 from vector<1x1x1xf32>
    %240 = vector.shape_cast %231 : vector<8x128xf32> to vector<1x8x128xf32>
    %cst_63 = arith.constant dense<0.000000e+00> : vector<1xf32>
    %241 = vector.multi_reduction <add>, %240, %cst_63 [1, 2] : vector<1x8x128xf32> to vector<1xf32>
    %242 = vector.shape_cast %241 : vector<1xf32> to vector<1x1x1xf32>
    %243 = vector.extract %242[0, 0, 0] : f32 from vector<1x1x1xf32>
    %cst_64 = arith.constant 9.765625E-4 : f32
    %244 = arith.mulf %235, %cst_64 : f32
    %cst_65 = arith.constant 9.765625E-4 : f32
    %245 = arith.mulf %239, %cst_65 : f32
    %246 = arith.mulf %244, %244 : f32
    %247 = arith.subf %245, %246 : f32
    %cst_66 = arith.constant 0.000000e+00 : f32
    %248 = arith.maximumf %247, %cst_66 : f32
    %249 = arith.mulf %191, %190 : f32
    %250 = arith.mulf %190, %190 : f32
    %251 = arith.mulf %250, %248 : f32
    %cst_67 = arith.constant 9.99999974E-6 : f32
    %252 = arith.addf %251, %cst_67 : f32
    %253 = math.rsqrt %252 : f32
    %254 = arith.mulf %249, %253 : f32
    %255 = arith.mulf %254, %244 : f32
    %256 = arith.subf %192, %255 : f32
    %257 = arith.mulf %254, %235 : f32
    %258 = arith.addf %170, %257 : f32
    %cst_68 = arith.constant 1.024000e+03 : f32
    %259 = arith.mulf %cst_68, %256 : f32
    %260 = arith.addf %258, %259 : f32
    %261 = arith.mulf %254, %254 : f32
    %262 = arith.mulf %261, %239 : f32
    %263 = arith.addf %186, %262 : f32
    %cst_69 = arith.constant 1.024000e+03 : f32
    %264 = arith.mulf %cst_69, %256 : f32
    %265 = arith.mulf %264, %256 : f32
    %266 = arith.addf %263, %265 : f32
    %cst_70 = arith.constant 2.000000e+00 : f32
    %267 = arith.mulf %cst_70, %254 : f32
    %268 = arith.mulf %267, %243 : f32
    %269 = arith.addf %266, %268 : f32
    %cst_71 = arith.constant 2.000000e+00 : f32
    %270 = arith.mulf %cst_71, %256 : f32
    %271 = arith.mulf %270, %170 : f32
    %272 = arith.addf %269, %271 : f32
    %cst_72 = arith.constant 2.000000e+00 : f32
    %273 = arith.mulf %cst_72, %254 : f32
    %274 = arith.mulf %273, %256 : f32
    %275 = arith.mulf %274, %235 : f32
    %276 = arith.addf %272, %275 : f32
    %c21 = arith.constant 21 : index
    %277 = memref.load %arg0[%c21] : memref<63xf32, #tpu.memory_space<smem>>
    %c22 = arith.constant 22 : index
    %278 = memref.load %arg0[%c22] : memref<63xf32, #tpu.memory_space<smem>>
    %c23 = arith.constant 23 : index
    %279 = memref.load %arg0[%c23] : memref<63xf32, #tpu.memory_space<smem>>
    %c24 = arith.constant 24 : index
    %280 = memref.load %arg0[%c24] : memref<63xf32, #tpu.memory_space<smem>>
    %c26 = arith.constant 26 : index
    %281 = memref.load %arg0[%c26] : memref<63xf32, #tpu.memory_space<smem>>
    %c27 = arith.constant 27 : index
    %282 = memref.load %arg0[%c27] : memref<63xf32, #tpu.memory_space<smem>>
    %cst_73 = arith.constant 9.765625E-4 : f32
    %283 = arith.mulf %260, %cst_73 : f32
    %cst_74 = arith.constant 9.765625E-4 : f32
    %284 = arith.mulf %276, %cst_74 : f32
    %285 = arith.mulf %283, %283 : f32
    %286 = arith.subf %284, %285 : f32
    %cst_75 = arith.constant 0.000000e+00 : f32
    %287 = arith.maximumf %286, %cst_75 : f32
    %288 = arith.mulf %278, %277 : f32
    %289 = arith.mulf %277, %277 : f32
    %290 = arith.mulf %289, %287 : f32
    %cst_76 = arith.constant 9.99999974E-6 : f32
    %291 = arith.addf %290, %cst_76 : f32
    %292 = math.rsqrt %291 : f32
    %293 = arith.mulf %288, %292 : f32
    %294 = arith.mulf %293, %283 : f32
    %295 = arith.subf %279, %294 : f32
    %c0_i32_77 = arith.constant 0 : i32
    %c8_i32_78 = arith.constant 8 : i32
    %296 = arith.muli %c0_i32_77, %c8_i32_78 : i32
    %297 = tpu.assume_multiple %296, 8 : i32
    %298 = arith.index_cast %297 : i32 to index
    %c0_79 = arith.constant 0 : index
    %299 = vector.load %arg2[%298, %c0_79] : memref<8x128xf32, #tpu.memory_space<vmem>>, vector<8x128xf32>
    %300 = arith.index_cast %297 : i32 to index
    %c0_80 = arith.constant 0 : index
    %301 = vector.load %arg3[%300, %c0_80] : memref<8x128xf32, #tpu.memory_space<vmem>>, vector<8x128xf32>
    %302 = vector.broadcast %254 : f32 to vector<8x128xf32>
    %303 = arith.mulf %302, %301 : vector<8x128xf32>
    %304 = arith.addf %299, %303 : vector<8x128xf32>
    %305 = vector.broadcast %256 : f32 to vector<8x128xf32>
    %306 = arith.addf %304, %305 : vector<8x128xf32>
    %307 = arith.index_cast %297 : i32 to index
    %c0_81 = arith.constant 0 : index
    %308 = vector.load %arg2[%307, %c0_81] : memref<8x128xf32, #tpu.memory_space<vmem>>, vector<8x128xf32>
    tpu.vector_store %arg2[%307, %c0_81], %306 {strides = array<i32>} : memref<8x128xf32, #tpu.memory_space<vmem>>, vector<8x128xf32>,
    %309 = vector.broadcast %293 : f32 to vector<8x128xf32>
    %310 = arith.mulf %309, %306 : vector<8x128xf32>
    %311 = vector.broadcast %295 : f32 to vector<8x128xf32>
    %312 = arith.addf %310, %311 : vector<8x128xf32>
    %cst_82 = arith.constant 0.000000e+00 : f32
    %313 = vector.broadcast %cst_82 : f32 to vector<8x128xf32>
    %314 = arith.maximumf %312, %313 : vector<8x128xf32>
    %315 = arith.index_cast %297 : i32 to index
    %c0_83 = arith.constant 0 : index
    %316 = vector.load %arg3[%315, %c0_83] : memref<8x128xf32, #tpu.memory_space<vmem>>, vector<8x128xf32>
    tpu.vector_store %arg3[%315, %c0_83], %314 {strides = array<i32>} : memref<8x128xf32, #tpu.memory_space<vmem>>, vector<8x128xf32>,
    %317 = arith.addf %0, %314 : vector<8x128xf32>
    %318 = arith.mulf %314, %314 : vector<8x128xf32>
    %319 = arith.addf %0, %318 : vector<8x128xf32>
    %320 = arith.mulf %306, %314 : vector<8x128xf32>
    %321 = arith.addf %0, %320 : vector<8x128xf32>
    %c1_i32_84 = arith.constant 1 : i32
    %322 = vector.shape_cast %317 : vector<8x128xf32> to vector<1x8x128xf32>
    %cst_85 = arith.constant dense<0.000000e+00> : vector<1xf32>
    %323 = vector.multi_reduction <add>, %322, %cst_85 [1, 2] : vector<1x8x128xf32> to vector<1xf32>
    %324 = vector.shape_cast %323 : vector<1xf32> to vector<1x1x1xf32>
    %325 = vector.extract %324[0, 0, 0] : f32 from vector<1x1x1xf32>
    %326 = vector.shape_cast %319 : vector<8x128xf32> to vector<1x8x128xf32>
    %cst_86 = arith.constant dense<0.000000e+00> : vector<1xf32>
    %327 = vector.multi_reduction <add>, %326, %cst_86 [1, 2] : vector<1x8x128xf32> to vector<1xf32>
    %328 = vector.shape_cast %327 : vector<1xf32> to vector<1x1x1xf32>
    %329 = vector.extract %328[0, 0, 0] : f32 from vector<1x1x1xf32>
    %330 = vector.shape_cast %321 : vector<8x128xf32> to vector<1x8x128xf32>
    %cst_87 = arith.constant dense<0.000000e+00> : vector<1xf32>
    %331 = vector.multi_reduction <add>, %330, %cst_87 [1, 2] : vector<1x8x128xf32> to vector<1xf32>
    %332 = vector.shape_cast %331 : vector<1xf32> to vector<1x1x1xf32>
    %333 = vector.extract %332[0, 0, 0] : f32 from vector<1x1x1xf32>
    %cst_88 = arith.constant 9.765625E-4 : f32
    %334 = arith.mulf %325, %cst_88 : f32
    %cst_89 = arith.constant 9.765625E-4 : f32
    %335 = arith.mulf %329, %cst_89 : f32
    %336 = arith.mulf %334, %334 : f32
    %337 = arith.subf %335, %336 : f32
    %cst_90 = arith.constant 0.000000e+00 : f32
    %338 = arith.maximumf %337, %cst_90 : f32
    %339 = arith.mulf %281, %280 : f32
    %340 = arith.mulf %280, %280 : f32
    %341 = arith.mulf %340, %338 : f32
    %cst_91 = arith.constant 9.99999974E-6 : f32
    %342 = arith.addf %341, %cst_91 : f32
    %343 = math.rsqrt %342 : f32
    %344 = arith.mulf %339, %343 : f32
    %345 = arith.mulf %344, %334 : f32
    %346 = arith.subf %282, %345 : f32
    %347 = arith.mulf %344, %325 : f32
    %348 = arith.addf %260, %347 : f32
    %cst_92 = arith.constant 1.024000e+03 : f32
    %349 = arith.mulf %cst_92, %346 : f32
    %350 = arith.addf %348, %349 : f32
    %351 = arith.mulf %344, %344 : f32
    %352 = arith.mulf %351, %329 : f32
    %353 = arith.addf %276, %352 : f32
    %cst_93 = arith.constant 1.024000e+03 : f32
    %354 = arith.mulf %cst_93, %346 : f32
    %355 = arith.mulf %354, %346 : f32
    %356 = arith.addf %353, %355 : f32
    %cst_94 = arith.constant 2.000000e+00 : f32
    %357 = arith.mulf %cst_94, %344 : f32
    %358 = arith.mulf %357, %333 : f32
    %359 = arith.addf %356, %358 : f32
    %cst_95 = arith.constant 2.000000e+00 : f32
    %360 = arith.mulf %cst_95, %346 : f32
    %361 = arith.mulf %360, %260 : f32
    %362 = arith.addf %359, %361 : f32
    %cst_96 = arith.constant 2.000000e+00 : f32
    %363 = arith.mulf %cst_96, %344 : f32
    %364 = arith.mulf %363, %346 : f32
    %365 = arith.mulf %364, %325 : f32
    %366 = arith.addf %362, %365 : f32
    %c28 = arith.constant 28 : index
    %367 = memref.load %arg0[%c28] : memref<63xf32, #tpu.memory_space<smem>>
    %c29 = arith.constant 29 : index
    %368 = memref.load %arg0[%c29] : memref<63xf32, #tpu.memory_space<smem>>
    %c30 = arith.constant 30 : index
    %369 = memref.load %arg0[%c30] : memref<63xf32, #tpu.memory_space<smem>>
    %c31 = arith.constant 31 : index
    %370 = memref.load %arg0[%c31] : memref<63xf32, #tpu.memory_space<smem>>
    %c33 = arith.constant 33 : index
    %371 = memref.load %arg0[%c33] : memref<63xf32, #tpu.memory_space<smem>>
    %c34 = arith.constant 34 : index
    %372 = memref.load %arg0[%c34] : memref<63xf32, #tpu.memory_space<smem>>
    %cst_97 = arith.constant 9.765625E-4 : f32
    %373 = arith.mulf %350, %cst_97 : f32
    %cst_98 = arith.constant 9.765625E-4 : f32
    %374 = arith.mulf %366, %cst_98 : f32
    %375 = arith.mulf %373, %373 : f32
    %376 = arith.subf %374, %375 : f32
    %cst_99 = arith.constant 0.000000e+00 : f32
    %377 = arith.maximumf %376, %cst_99 : f32
    %378 = arith.mulf %368, %367 : f32
    %379 = arith.mulf %367, %367 : f32
    %380 = arith.mulf %379, %377 : f32
    %cst_100 = arith.constant 9.99999974E-6 : f32
    %381 = arith.addf %380, %cst_100 : f32
    %382 = math.rsqrt %381 : f32
    %383 = arith.mulf %378, %382 : f32
    %384 = arith.mulf %383, %373 : f32
    %385 = arith.subf %369, %384 : f32
    %c0_i32_101 = arith.constant 0 : i32
    %c8_i32_102 = arith.constant 8 : i32
    %386 = arith.muli %c0_i32_101, %c8_i32_102 : i32
    %387 = tpu.assume_multiple %386, 8 : i32
    %388 = arith.index_cast %387 : i32 to index
    %c0_103 = arith.constant 0 : index
    %389 = vector.load %arg2[%388, %c0_103] : memref<8x128xf32, #tpu.memory_space<vmem>>, vector<8x128xf32>
    %390 = arith.index_cast %387 : i32 to index
    %c0_104 = arith.constant 0 : index
    %391 = vector.load %arg3[%390, %c0_104] : memref<8x128xf32, #tpu.memory_space<vmem>>, vector<8x128xf32>
    %392 = vector.broadcast %344 : f32 to vector<8x128xf32>
    %393 = arith.mulf %392, %391 : vector<8x128xf32>
    %394 = arith.addf %389, %393 : vector<8x128xf32>
    %395 = vector.broadcast %346 : f32 to vector<8x128xf32>
    %396 = arith.addf %394, %395 : vector<8x128xf32>
    %397 = arith.index_cast %387 : i32 to index
    %c0_105 = arith.constant 0 : index
    %398 = vector.load %arg2[%397, %c0_105] : memref<8x128xf32, #tpu.memory_space<vmem>>, vector<8x128xf32>
    tpu.vector_store %arg2[%397, %c0_105], %396 {strides = array<i32>} : memref<8x128xf32, #tpu.memory_space<vmem>>, vector<8x128xf32>,
    %399 = vector.broadcast %383 : f32 to vector<8x128xf32>
    %400 = arith.mulf %399, %396 : vector<8x128xf32>
    %401 = vector.broadcast %385 : f32 to vector<8x128xf32>
    %402 = arith.addf %400, %401 : vector<8x128xf32>
    %cst_106 = arith.constant 0.000000e+00 : f32
    %403 = vector.broadcast %cst_106 : f32 to vector<8x128xf32>
    %404 = arith.maximumf %402, %403 : vector<8x128xf32>
    %405 = arith.index_cast %387 : i32 to index
    %c0_107 = arith.constant 0 : index
    %406 = vector.load %arg3[%405, %c0_107] : memref<8x128xf32, #tpu.memory_space<vmem>>, vector<8x128xf32>
    tpu.vector_store %arg3[%405, %c0_107], %404 {strides = array<i32>} : memref<8x128xf32, #tpu.memory_space<vmem>>, vector<8x128xf32>,
    %407 = arith.addf %0, %404 : vector<8x128xf32>
    %408 = arith.mulf %404, %404 : vector<8x128xf32>
    %409 = arith.addf %0, %408 : vector<8x128xf32>
    %410 = arith.mulf %396, %404 : vector<8x128xf32>
    %411 = arith.addf %0, %410 : vector<8x128xf32>
    %c1_i32_108 = arith.constant 1 : i32
    %412 = vector.shape_cast %407 : vector<8x128xf32> to vector<1x8x128xf32>
    %cst_109 = arith.constant dense<0.000000e+00> : vector<1xf32>
    %413 = vector.multi_reduction <add>, %412, %cst_109 [1, 2] : vector<1x8x128xf32> to vector<1xf32>
    %414 = vector.shape_cast %413 : vector<1xf32> to vector<1x1x1xf32>
    %415 = vector.extract %414[0, 0, 0] : f32 from vector<1x1x1xf32>
    %416 = vector.shape_cast %409 : vector<8x128xf32> to vector<1x8x128xf32>
    %cst_110 = arith.constant dense<0.000000e+00> : vector<1xf32>
    %417 = vector.multi_reduction <add>, %416, %cst_110 [1, 2] : vector<1x8x128xf32> to vector<1xf32>
    %418 = vector.shape_cast %417 : vector<1xf32> to vector<1x1x1xf32>
    %419 = vector.extract %418[0, 0, 0] : f32 from vector<1x1x1xf32>
    %420 = vector.shape_cast %411 : vector<8x128xf32> to vector<1x8x128xf32>
    %cst_111 = arith.constant dense<0.000000e+00> : vector<1xf32>
    %421 = vector.multi_reduction <add>, %420, %cst_111 [1, 2] : vector<1x8x128xf32> to vector<1xf32>
    %422 = vector.shape_cast %421 : vector<1xf32> to vector<1x1x1xf32>
    %423 = vector.extract %422[0, 0, 0] : f32 from vector<1x1x1xf32>
    %cst_112 = arith.constant 9.765625E-4 : f32
    %424 = arith.mulf %415, %cst_112 : f32
    %cst_113 = arith.constant 9.765625E-4 : f32
    %425 = arith.mulf %419, %cst_113 : f32
    %426 = arith.mulf %424, %424 : f32
    %427 = arith.subf %425, %426 : f32
    %cst_114 = arith.constant 0.000000e+00 : f32
    %428 = arith.maximumf %427, %cst_114 : f32
    %429 = arith.mulf %371, %370 : f32
    %430 = arith.mulf %370, %370 : f32
    %431 = arith.mulf %430, %428 : f32
    %cst_115 = arith.constant 9.99999974E-6 : f32
    %432 = arith.addf %431, %cst_115 : f32
    %433 = math.rsqrt %432 : f32
    %434 = arith.mulf %429, %433 : f32
    %435 = arith.mulf %434, %424 : f32
    %436 = arith.subf %372, %435 : f32
    %437 = arith.mulf %434, %415 : f32
    %438 = arith.addf %350, %437 : f32
    %cst_116 = arith.constant 1.024000e+03 : f32
    %439 = arith.mulf %cst_116, %436 : f32
    %440 = arith.addf %438, %439 : f32
    %441 = arith.mulf %434, %434 : f32
    %442 = arith.mulf %441, %419 : f32
    %443 = arith.addf %366, %442 : f32
    %cst_117 = arith.constant 1.024000e+03 : f32
    %444 = arith.mulf %cst_117, %436 : f32
    %445 = arith.mulf %444, %436 : f32
    %446 = arith.addf %443, %445 : f32
    %cst_118 = arith.constant 2.000000e+00 : f32
    %447 = arith.mulf %cst_118, %434 : f32
    %448 = arith.mulf %447, %423 : f32
    %449 = arith.addf %446, %448 : f32
    %cst_119 = arith.constant 2.000000e+00 : f32
    %450 = arith.mulf %cst_119, %436 : f32
    %451 = arith.mulf %450, %350 : f32
    %452 = arith.addf %449, %451 : f32
    %cst_120 = arith.constant 2.000000e+00 : f32
    %453 = arith.mulf %cst_120, %434 : f32
    %454 = arith.mulf %453, %436 : f32
    %455 = arith.mulf %454, %415 : f32
    %456 = arith.addf %452, %455 : f32
    %c35 = arith.constant 35 : index
    %457 = memref.load %arg0[%c35] : memref<63xf32, #tpu.memory_space<smem>>
    %c36 = arith.constant 36 : index
    %458 = memref.load %arg0[%c36] : memref<63xf32, #tpu.memory_space<smem>>
    %c37 = arith.constant 37 : index
    %459 = memref.load %arg0[%c37] : memref<63xf32, #tpu.memory_space<smem>>
    %c38 = arith.constant 38 : index
    %460 = memref.load %arg0[%c38] : memref<63xf32, #tpu.memory_space<smem>>
    %c40 = arith.constant 40 : index
    %461 = memref.load %arg0[%c40] : memref<63xf32, #tpu.memory_space<smem>>
    %c41 = arith.constant 41 : index
    %462 = memref.load %arg0[%c41] : memref<63xf32, #tpu.memory_space<smem>>
    %cst_121 = arith.constant 9.765625E-4 : f32
    %463 = arith.mulf %440, %cst_121 : f32
    %cst_122 = arith.constant 9.765625E-4 : f32
    %464 = arith.mulf %456, %cst_122 : f32
    %465 = arith.mulf %463, %463 : f32
    %466 = arith.subf %464, %465 : f32
    %cst_123 = arith.constant 0.000000e+00 : f32
    %467 = arith.maximumf %466, %cst_123 : f32
    %468 = arith.mulf %458, %457 : f32
    %469 = arith.mulf %457, %457 : f32
    %470 = arith.mulf %469, %467 : f32
    %cst_124 = arith.constant 9.99999974E-6 : f32
    %471 = arith.addf %470, %cst_124 : f32
    %472 = math.rsqrt %471 : f32
    %473 = arith.mulf %468, %472 : f32
    %474 = arith.mulf %473, %463 : f32
    %475 = arith.subf %459, %474 : f32
    %c0_i32_125 = arith.constant 0 : i32
    %c8_i32_126 = arith.constant 8 : i32
    %476 = arith.muli %c0_i32_125, %c8_i32_126 : i32
    %477 = tpu.assume_multiple %476, 8 : i32
    %478 = arith.index_cast %477 : i32 to index
    %c0_127 = arith.constant 0 : index
    %479 = vector.load %arg2[%478, %c0_127] : memref<8x128xf32, #tpu.memory_space<vmem>>, vector<8x128xf32>
    %480 = arith.index_cast %477 : i32 to index
    %c0_128 = arith.constant 0 : index
    %481 = vector.load %arg3[%480, %c0_128] : memref<8x128xf32, #tpu.memory_space<vmem>>, vector<8x128xf32>
    %482 = vector.broadcast %434 : f32 to vector<8x128xf32>
    %483 = arith.mulf %482, %481 : vector<8x128xf32>
    %484 = arith.addf %479, %483 : vector<8x128xf32>
    %485 = vector.broadcast %436 : f32 to vector<8x128xf32>
    %486 = arith.addf %484, %485 : vector<8x128xf32>
    %487 = arith.index_cast %477 : i32 to index
    %c0_129 = arith.constant 0 : index
    %488 = vector.load %arg2[%487, %c0_129] : memref<8x128xf32, #tpu.memory_space<vmem>>, vector<8x128xf32>
    tpu.vector_store %arg2[%487, %c0_129], %486 {strides = array<i32>} : memref<8x128xf32, #tpu.memory_space<vmem>>, vector<8x128xf32>,
    %489 = vector.broadcast %473 : f32 to vector<8x128xf32>
    %490 = arith.mulf %489, %486 : vector<8x128xf32>
    %491 = vector.broadcast %475 : f32 to vector<8x128xf32>
    %492 = arith.addf %490, %491 : vector<8x128xf32>
    %cst_130 = arith.constant 0.000000e+00 : f32
    %493 = vector.broadcast %cst_130 : f32 to vector<8x128xf32>
    %494 = arith.maximumf %492, %493 : vector<8x128xf32>
    %495 = arith.index_cast %477 : i32 to index
    %c0_131 = arith.constant 0 : index
    %496 = vector.load %arg3[%495, %c0_131] : memref<8x128xf32, #tpu.memory_space<vmem>>, vector<8x128xf32>
    tpu.vector_store %arg3[%495, %c0_131], %494 {strides = array<i32>} : memref<8x128xf32, #tpu.memory_space<vmem>>, vector<8x128xf32>,
    %497 = arith.addf %0, %494 : vector<8x128xf32>
    %498 = arith.mulf %494, %494 : vector<8x128xf32>
    %499 = arith.addf %0, %498 : vector<8x128xf32>
    %500 = arith.mulf %486, %494 : vector<8x128xf32>
    %501 = arith.addf %0, %500 : vector<8x128xf32>
    %c1_i32_132 = arith.constant 1 : i32
    %502 = vector.shape_cast %497 : vector<8x128xf32> to vector<1x8x128xf32>
    %cst_133 = arith.constant dense<0.000000e+00> : vector<1xf32>
    %503 = vector.multi_reduction <add>, %502, %cst_133 [1, 2] : vector<1x8x128xf32> to vector<1xf32>
    %504 = vector.shape_cast %503 : vector<1xf32> to vector<1x1x1xf32>
    %505 = vector.extract %504[0, 0, 0] : f32 from vector<1x1x1xf32>
    %506 = vector.shape_cast %499 : vector<8x128xf32> to vector<1x8x128xf32>
    %cst_134 = arith.constant dense<0.000000e+00> : vector<1xf32>
    %507 = vector.multi_reduction <add>, %506, %cst_134 [1, 2] : vector<1x8x128xf32> to vector<1xf32>
    %508 = vector.shape_cast %507 : vector<1xf32> to vector<1x1x1xf32>
    %509 = vector.extract %508[0, 0, 0] : f32 from vector<1x1x1xf32>
    %510 = vector.shape_cast %501 : vector<8x128xf32> to vector<1x8x128xf32>
    %cst_135 = arith.constant dense<0.000000e+00> : vector<1xf32>
    %511 = vector.multi_reduction <add>, %510, %cst_135 [1, 2] : vector<1x8x128xf32> to vector<1xf32>
    %512 = vector.shape_cast %511 : vector<1xf32> to vector<1x1x1xf32>
    %513 = vector.extract %512[0, 0, 0] : f32 from vector<1x1x1xf32>
    %cst_136 = arith.constant 9.765625E-4 : f32
    %514 = arith.mulf %505, %cst_136 : f32
    %cst_137 = arith.constant 9.765625E-4 : f32
    %515 = arith.mulf %509, %cst_137 : f32
    %516 = arith.mulf %514, %514 : f32
    %517 = arith.subf %515, %516 : f32
    %cst_138 = arith.constant 0.000000e+00 : f32
    %518 = arith.maximumf %517, %cst_138 : f32
    %519 = arith.mulf %461, %460 : f32
    %520 = arith.mulf %460, %460 : f32
    %521 = arith.mulf %520, %518 : f32
    %cst_139 = arith.constant 9.99999974E-6 : f32
    %522 = arith.addf %521, %cst_139 : f32
    %523 = math.rsqrt %522 : f32
    %524 = arith.mulf %519, %523 : f32
    %525 = arith.mulf %524, %514 : f32
    %526 = arith.subf %462, %525 : f32
    %527 = arith.mulf %524, %505 : f32
    %528 = arith.addf %440, %527 : f32
    %cst_140 = arith.constant 1.024000e+03 : f32
    %529 = arith.mulf %cst_140, %526 : f32
    %530 = arith.addf %528, %529 : f32
    %531 = arith.mulf %524, %524 : f32
    %532 = arith.mulf %531, %509 : f32
    %533 = arith.addf %456, %532 : f32
    %cst_141 = arith.constant 1.024000e+03 : f32
    %534 = arith.mulf %cst_141, %526 : f32
    %535 = arith.mulf %534, %526 : f32
    %536 = arith.addf %533, %535 : f32
    %cst_142 = arith.constant 2.000000e+00 : f32
    %537 = arith.mulf %cst_142, %524 : f32
    %538 = arith.mulf %537, %513 : f32
    %539 = arith.addf %536, %538 : f32
    %cst_143 = arith.constant 2.000000e+00 : f32
    %540 = arith.mulf %cst_143, %526 : f32
    %541 = arith.mulf %540, %440 : f32
    %542 = arith.addf %539, %541 : f32
    %cst_144 = arith.constant 2.000000e+00 : f32
    %543 = arith.mulf %cst_144, %524 : f32
    %544 = arith.mulf %543, %526 : f32
    %545 = arith.mulf %544, %505 : f32
    %546 = arith.addf %542, %545 : f32
    %c42 = arith.constant 42 : index
    %547 = memref.load %arg0[%c42] : memref<63xf32, #tpu.memory_space<smem>>
    %c43 = arith.constant 43 : index
    %548 = memref.load %arg0[%c43] : memref<63xf32, #tpu.memory_space<smem>>
    %c44 = arith.constant 44 : index
    %549 = memref.load %arg0[%c44] : memref<63xf32, #tpu.memory_space<smem>>
    %c45 = arith.constant 45 : index
    %550 = memref.load %arg0[%c45] : memref<63xf32, #tpu.memory_space<smem>>
    %c47 = arith.constant 47 : index
    %551 = memref.load %arg0[%c47] : memref<63xf32, #tpu.memory_space<smem>>
    %c48 = arith.constant 48 : index
    %552 = memref.load %arg0[%c48] : memref<63xf32, #tpu.memory_space<smem>>
    %cst_145 = arith.constant 9.765625E-4 : f32
    %553 = arith.mulf %530, %cst_145 : f32
    %cst_146 = arith.constant 9.765625E-4 : f32
    %554 = arith.mulf %546, %cst_146 : f32
    %555 = arith.mulf %553, %553 : f32
    %556 = arith.subf %554, %555 : f32
    %cst_147 = arith.constant 0.000000e+00 : f32
    %557 = arith.maximumf %556, %cst_147 : f32
    %558 = arith.mulf %548, %547 : f32
    %559 = arith.mulf %547, %547 : f32
    %560 = arith.mulf %559, %557 : f32
    %cst_148 = arith.constant 9.99999974E-6 : f32
    %561 = arith.addf %560, %cst_148 : f32
    %562 = math.rsqrt %561 : f32
    %563 = arith.mulf %558, %562 : f32
    %564 = arith.mulf %563, %553 : f32
    %565 = arith.subf %549, %564 : f32
    %c0_i32_149 = arith.constant 0 : i32
    %c8_i32_150 = arith.constant 8 : i32
    %566 = arith.muli %c0_i32_149, %c8_i32_150 : i32
    %567 = tpu.assume_multiple %566, 8 : i32
    %568 = arith.index_cast %567 : i32 to index
    %c0_151 = arith.constant 0 : index
    %569 = vector.load %arg2[%568, %c0_151] : memref<8x128xf32, #tpu.memory_space<vmem>>, vector<8x128xf32>
    %570 = arith.index_cast %567 : i32 to index
    %c0_152 = arith.constant 0 : index
    %571 = vector.load %arg3[%570, %c0_152] : memref<8x128xf32, #tpu.memory_space<vmem>>, vector<8x128xf32>
    %572 = vector.broadcast %524 : f32 to vector<8x128xf32>
    %573 = arith.mulf %572, %571 : vector<8x128xf32>
    %574 = arith.addf %569, %573 : vector<8x128xf32>
    %575 = vector.broadcast %526 : f32 to vector<8x128xf32>
    %576 = arith.addf %574, %575 : vector<8x128xf32>
    %577 = arith.index_cast %567 : i32 to index
    %c0_153 = arith.constant 0 : index
    %578 = vector.load %arg2[%577, %c0_153] : memref<8x128xf32, #tpu.memory_space<vmem>>, vector<8x128xf32>
    tpu.vector_store %arg2[%577, %c0_153], %576 {strides = array<i32>} : memref<8x128xf32, #tpu.memory_space<vmem>>, vector<8x128xf32>,
    %579 = vector.broadcast %563 : f32 to vector<8x128xf32>
    %580 = arith.mulf %579, %576 : vector<8x128xf32>
    %581 = vector.broadcast %565 : f32 to vector<8x128xf32>
    %582 = arith.addf %580, %581 : vector<8x128xf32>
    %cst_154 = arith.constant 0.000000e+00 : f32
    %583 = vector.broadcast %cst_154 : f32 to vector<8x128xf32>
    %584 = arith.maximumf %582, %583 : vector<8x128xf32>
    %585 = arith.index_cast %567 : i32 to index
    %c0_155 = arith.constant 0 : index
    %586 = vector.load %arg3[%585, %c0_155] : memref<8x128xf32, #tpu.memory_space<vmem>>, vector<8x128xf32>
    tpu.vector_store %arg3[%585, %c0_155], %584 {strides = array<i32>} : memref<8x128xf32, #tpu.memory_space<vmem>>, vector<8x128xf32>,
    %587 = arith.addf %0, %584 : vector<8x128xf32>
    %588 = arith.mulf %584, %584 : vector<8x128xf32>
    %589 = arith.addf %0, %588 : vector<8x128xf32>
    %590 = arith.mulf %576, %584 : vector<8x128xf32>
    %591 = arith.addf %0, %590 : vector<8x128xf32>
    %c1_i32_156 = arith.constant 1 : i32
    %592 = vector.shape_cast %587 : vector<8x128xf32> to vector<1x8x128xf32>
    %cst_157 = arith.constant dense<0.000000e+00> : vector<1xf32>
    %593 = vector.multi_reduction <add>, %592, %cst_157 [1, 2] : vector<1x8x128xf32> to vector<1xf32>
    %594 = vector.shape_cast %593 : vector<1xf32> to vector<1x1x1xf32>
    %595 = vector.extract %594[0, 0, 0] : f32 from vector<1x1x1xf32>
    %596 = vector.shape_cast %589 : vector<8x128xf32> to vector<1x8x128xf32>
    %cst_158 = arith.constant dense<0.000000e+00> : vector<1xf32>
    %597 = vector.multi_reduction <add>, %596, %cst_158 [1, 2] : vector<1x8x128xf32> to vector<1xf32>
    %598 = vector.shape_cast %597 : vector<1xf32> to vector<1x1x1xf32>
    %599 = vector.extract %598[0, 0, 0] : f32 from vector<1x1x1xf32>
    %600 = vector.shape_cast %591 : vector<8x128xf32> to vector<1x8x128xf32>
    %cst_159 = arith.constant dense<0.000000e+00> : vector<1xf32>
    %601 = vector.multi_reduction <add>, %600, %cst_159 [1, 2] : vector<1x8x128xf32> to vector<1xf32>
    %602 = vector.shape_cast %601 : vector<1xf32> to vector<1x1x1xf32>
    %603 = vector.extract %602[0, 0, 0] : f32 from vector<1x1x1xf32>
    %cst_160 = arith.constant 9.765625E-4 : f32
    %604 = arith.mulf %595, %cst_160 : f32
    %cst_161 = arith.constant 9.765625E-4 : f32
    %605 = arith.mulf %599, %cst_161 : f32
    %606 = arith.mulf %604, %604 : f32
    %607 = arith.subf %605, %606 : f32
    %cst_162 = arith.constant 0.000000e+00 : f32
    %608 = arith.maximumf %607, %cst_162 : f32
    %609 = arith.mulf %551, %550 : f32
    %610 = arith.mulf %550, %550 : f32
    %611 = arith.mulf %610, %608 : f32
    %cst_163 = arith.constant 9.99999974E-6 : f32
    %612 = arith.addf %611, %cst_163 : f32
    %613 = math.rsqrt %612 : f32
    %614 = arith.mulf %609, %613 : f32
    %615 = arith.mulf %614, %604 : f32
    %616 = arith.subf %552, %615 : f32
    %617 = arith.mulf %614, %595 : f32
    %618 = arith.addf %530, %617 : f32
    %cst_164 = arith.constant 1.024000e+03 : f32
    %619 = arith.mulf %cst_164, %616 : f32
    %620 = arith.addf %618, %619 : f32
    %621 = arith.mulf %614, %614 : f32
    %622 = arith.mulf %621, %599 : f32
    %623 = arith.addf %546, %622 : f32
    %cst_165 = arith.constant 1.024000e+03 : f32
    %624 = arith.mulf %cst_165, %616 : f32
    %625 = arith.mulf %624, %616 : f32
    %626 = arith.addf %623, %625 : f32
    %cst_166 = arith.constant 2.000000e+00 : f32
    %627 = arith.mulf %cst_166, %614 : f32
    %628 = arith.mulf %627, %603 : f32
    %629 = arith.addf %626, %628 : f32
    %cst_167 = arith.constant 2.000000e+00 : f32
    %630 = arith.mulf %cst_167, %616 : f32
    %631 = arith.mulf %630, %530 : f32
    %632 = arith.addf %629, %631 : f32
    %cst_168 = arith.constant 2.000000e+00 : f32
    %633 = arith.mulf %cst_168, %614 : f32
    %634 = arith.mulf %633, %616 : f32
    %635 = arith.mulf %634, %595 : f32
    %636 = arith.addf %632, %635 : f32
    %c49 = arith.constant 49 : index
    %637 = memref.load %arg0[%c49] : memref<63xf32, #tpu.memory_space<smem>>
    %c50 = arith.constant 50 : index
    %638 = memref.load %arg0[%c50] : memref<63xf32, #tpu.memory_space<smem>>
    %c51 = arith.constant 51 : index
    %639 = memref.load %arg0[%c51] : memref<63xf32, #tpu.memory_space<smem>>
    %c52 = arith.constant 52 : index
    %640 = memref.load %arg0[%c52] : memref<63xf32, #tpu.memory_space<smem>>
    %c54 = arith.constant 54 : index
    %641 = memref.load %arg0[%c54] : memref<63xf32, #tpu.memory_space<smem>>
    %c55 = arith.constant 55 : index
    %642 = memref.load %arg0[%c55] : memref<63xf32, #tpu.memory_space<smem>>
    %cst_169 = arith.constant 9.765625E-4 : f32
    %643 = arith.mulf %620, %cst_169 : f32
    %cst_170 = arith.constant 9.765625E-4 : f32
    %644 = arith.mulf %636, %cst_170 : f32
    %645 = arith.mulf %643, %643 : f32
    %646 = arith.subf %644, %645 : f32
    %cst_171 = arith.constant 0.000000e+00 : f32
    %647 = arith.maximumf %646, %cst_171 : f32
    %648 = arith.mulf %638, %637 : f32
    %649 = arith.mulf %637, %637 : f32
    %650 = arith.mulf %649, %647 : f32
    %cst_172 = arith.constant 9.99999974E-6 : f32
    %651 = arith.addf %650, %cst_172 : f32
    %652 = math.rsqrt %651 : f32
    %653 = arith.mulf %648, %652 : f32
    %654 = arith.mulf %653, %643 : f32
    %655 = arith.subf %639, %654 : f32
    %c0_i32_173 = arith.constant 0 : i32
    %c8_i32_174 = arith.constant 8 : i32
    %656 = arith.muli %c0_i32_173, %c8_i32_174 : i32
    %657 = tpu.assume_multiple %656, 8 : i32
    %658 = arith.index_cast %657 : i32 to index
    %c0_175 = arith.constant 0 : index
    %659 = vector.load %arg2[%658, %c0_175] : memref<8x128xf32, #tpu.memory_space<vmem>>, vector<8x128xf32>
    %660 = arith.index_cast %657 : i32 to index
    %c0_176 = arith.constant 0 : index
    %661 = vector.load %arg3[%660, %c0_176] : memref<8x128xf32, #tpu.memory_space<vmem>>, vector<8x128xf32>
    %662 = vector.broadcast %614 : f32 to vector<8x128xf32>
    %663 = arith.mulf %662, %661 : vector<8x128xf32>
    %664 = arith.addf %659, %663 : vector<8x128xf32>
    %665 = vector.broadcast %616 : f32 to vector<8x128xf32>
    %666 = arith.addf %664, %665 : vector<8x128xf32>
    %667 = arith.index_cast %657 : i32 to index
    %c0_177 = arith.constant 0 : index
    %668 = vector.load %arg2[%667, %c0_177] : memref<8x128xf32, #tpu.memory_space<vmem>>, vector<8x128xf32>
    tpu.vector_store %arg2[%667, %c0_177], %666 {strides = array<i32>} : memref<8x128xf32, #tpu.memory_space<vmem>>, vector<8x128xf32>,
    %669 = vector.broadcast %653 : f32 to vector<8x128xf32>
    %670 = arith.mulf %669, %666 : vector<8x128xf32>
    %671 = vector.broadcast %655 : f32 to vector<8x128xf32>
    %672 = arith.addf %670, %671 : vector<8x128xf32>
    %cst_178 = arith.constant 0.000000e+00 : f32
    %673 = vector.broadcast %cst_178 : f32 to vector<8x128xf32>
    %674 = arith.maximumf %672, %673 : vector<8x128xf32>
    %675 = arith.index_cast %657 : i32 to index
    %c0_179 = arith.constant 0 : index
    %676 = vector.load %arg3[%675, %c0_179] : memref<8x128xf32, #tpu.memory_space<vmem>>, vector<8x128xf32>
    tpu.vector_store %arg3[%675, %c0_179], %674 {strides = array<i32>} : memref<8x128xf32, #tpu.memory_space<vmem>>, vector<8x128xf32>,
    %677 = arith.addf %0, %674 : vector<8x128xf32>
    %678 = arith.mulf %674, %674 : vector<8x128xf32>
    %679 = arith.addf %0, %678 : vector<8x128xf32>
    %680 = arith.mulf %666, %674 : vector<8x128xf32>
    %681 = arith.addf %0, %680 : vector<8x128xf32>
    %c1_i32_180 = arith.constant 1 : i32
    %682 = vector.shape_cast %677 : vector<8x128xf32> to vector<1x8x128xf32>
    %cst_181 = arith.constant dense<0.000000e+00> : vector<1xf32>
    %683 = vector.multi_reduction <add>, %682, %cst_181 [1, 2] : vector<1x8x128xf32> to vector<1xf32>
    %684 = vector.shape_cast %683 : vector<1xf32> to vector<1x1x1xf32>
    %685 = vector.extract %684[0, 0, 0] : f32 from vector<1x1x1xf32>
    %686 = vector.shape_cast %679 : vector<8x128xf32> to vector<1x8x128xf32>
    %cst_182 = arith.constant dense<0.000000e+00> : vector<1xf32>
    %687 = vector.multi_reduction <add>, %686, %cst_182 [1, 2] : vector<1x8x128xf32> to vector<1xf32>
    %688 = vector.shape_cast %687 : vector<1xf32> to vector<1x1x1xf32>
    %689 = vector.extract %688[0, 0, 0] : f32 from vector<1x1x1xf32>
    %690 = vector.shape_cast %681 : vector<8x128xf32> to vector<1x8x128xf32>
    %cst_183 = arith.constant dense<0.000000e+00> : vector<1xf32>
    %691 = vector.multi_reduction <add>, %690, %cst_183 [1, 2] : vector<1x8x128xf32> to vector<1xf32>
    %692 = vector.shape_cast %691 : vector<1xf32> to vector<1x1x1xf32>
    %693 = vector.extract %692[0, 0, 0] : f32 from vector<1x1x1xf32>
    %cst_184 = arith.constant 9.765625E-4 : f32
    %694 = arith.mulf %685, %cst_184 : f32
    %cst_185 = arith.constant 9.765625E-4 : f32
    %695 = arith.mulf %689, %cst_185 : f32
    %696 = arith.mulf %694, %694 : f32
    %697 = arith.subf %695, %696 : f32
    %cst_186 = arith.constant 0.000000e+00 : f32
    %698 = arith.maximumf %697, %cst_186 : f32
    %699 = arith.mulf %641, %640 : f32
    %700 = arith.mulf %640, %640 : f32
    %701 = arith.mulf %700, %698 : f32
    %cst_187 = arith.constant 9.99999974E-6 : f32
    %702 = arith.addf %701, %cst_187 : f32
    %703 = math.rsqrt %702 : f32
    %704 = arith.mulf %699, %703 : f32
    %705 = arith.mulf %704, %694 : f32
    %706 = arith.subf %642, %705 : f32
    %707 = arith.mulf %704, %685 : f32
    %708 = arith.addf %620, %707 : f32
    %cst_188 = arith.constant 1.024000e+03 : f32
    %709 = arith.mulf %cst_188, %706 : f32
    %710 = arith.addf %708, %709 : f32
    %711 = arith.mulf %704, %704 : f32
    %712 = arith.mulf %711, %689 : f32
    %713 = arith.addf %636, %712 : f32
    %cst_189 = arith.constant 1.024000e+03 : f32
    %714 = arith.mulf %cst_189, %706 : f32
    %715 = arith.mulf %714, %706 : f32
    %716 = arith.addf %713, %715 : f32
    %cst_190 = arith.constant 2.000000e+00 : f32
    %717 = arith.mulf %cst_190, %704 : f32
    %718 = arith.mulf %717, %693 : f32
    %719 = arith.addf %716, %718 : f32
    %cst_191 = arith.constant 2.000000e+00 : f32
    %720 = arith.mulf %cst_191, %706 : f32
    %721 = arith.mulf %720, %620 : f32
    %722 = arith.addf %719, %721 : f32
    %cst_192 = arith.constant 2.000000e+00 : f32
    %723 = arith.mulf %cst_192, %704 : f32
    %724 = arith.mulf %723, %706 : f32
    %725 = arith.mulf %724, %685 : f32
    %726 = arith.addf %722, %725 : f32
    %c56 = arith.constant 56 : index
    %727 = memref.load %arg0[%c56] : memref<63xf32, #tpu.memory_space<smem>>
    %c57 = arith.constant 57 : index
    %728 = memref.load %arg0[%c57] : memref<63xf32, #tpu.memory_space<smem>>
    %c58 = arith.constant 58 : index
    %729 = memref.load %arg0[%c58] : memref<63xf32, #tpu.memory_space<smem>>
    %c59 = arith.constant 59 : index
    %730 = memref.load %arg0[%c59] : memref<63xf32, #tpu.memory_space<smem>>
    %c61 = arith.constant 61 : index
    %731 = memref.load %arg0[%c61] : memref<63xf32, #tpu.memory_space<smem>>
    %c62 = arith.constant 62 : index
    %732 = memref.load %arg0[%c62] : memref<63xf32, #tpu.memory_space<smem>>
    %cst_193 = arith.constant 9.765625E-4 : f32
    %733 = arith.mulf %710, %cst_193 : f32
    %cst_194 = arith.constant 9.765625E-4 : f32
    %734 = arith.mulf %726, %cst_194 : f32
    %735 = arith.mulf %733, %733 : f32
    %736 = arith.subf %734, %735 : f32
    %cst_195 = arith.constant 0.000000e+00 : f32
    %737 = arith.maximumf %736, %cst_195 : f32
    %738 = arith.mulf %728, %727 : f32
    %739 = arith.mulf %727, %727 : f32
    %740 = arith.mulf %739, %737 : f32
    %cst_196 = arith.constant 9.99999974E-6 : f32
    %741 = arith.addf %740, %cst_196 : f32
    %742 = math.rsqrt %741 : f32
    %743 = arith.mulf %738, %742 : f32
    %744 = arith.mulf %743, %733 : f32
    %745 = arith.subf %729, %744 : f32
    %c0_i32_197 = arith.constant 0 : i32
    %c8_i32_198 = arith.constant 8 : i32
    %746 = arith.muli %c0_i32_197, %c8_i32_198 : i32
    %747 = tpu.assume_multiple %746, 8 : i32
    %748 = arith.index_cast %747 : i32 to index
    %c0_199 = arith.constant 0 : index
    %749 = vector.load %arg2[%748, %c0_199] : memref<8x128xf32, #tpu.memory_space<vmem>>, vector<8x128xf32>
    %750 = arith.index_cast %747 : i32 to index
    %c0_200 = arith.constant 0 : index
    %751 = vector.load %arg3[%750, %c0_200] : memref<8x128xf32, #tpu.memory_space<vmem>>, vector<8x128xf32>
    %752 = vector.broadcast %704 : f32 to vector<8x128xf32>
    %753 = arith.mulf %752, %751 : vector<8x128xf32>
    %754 = arith.addf %749, %753 : vector<8x128xf32>
    %755 = vector.broadcast %706 : f32 to vector<8x128xf32>
    %756 = arith.addf %754, %755 : vector<8x128xf32>
    %757 = arith.index_cast %747 : i32 to index
    %c0_201 = arith.constant 0 : index
    %758 = vector.load %arg2[%757, %c0_201] : memref<8x128xf32, #tpu.memory_space<vmem>>, vector<8x128xf32>
    tpu.vector_store %arg2[%757, %c0_201], %756 {strides = array<i32>} : memref<8x128xf32, #tpu.memory_space<vmem>>, vector<8x128xf32>,
    %759 = vector.broadcast %743 : f32 to vector<8x128xf32>
    %760 = arith.mulf %759, %756 : vector<8x128xf32>
    %761 = vector.broadcast %745 : f32 to vector<8x128xf32>
    %762 = arith.addf %760, %761 : vector<8x128xf32>
    %cst_202 = arith.constant 0.000000e+00 : f32
    %763 = vector.broadcast %cst_202 : f32 to vector<8x128xf32>
    %764 = arith.maximumf %762, %763 : vector<8x128xf32>
    %765 = arith.index_cast %747 : i32 to index
    %c0_203 = arith.constant 0 : index
    %766 = vector.load %arg3[%765, %c0_203] : memref<8x128xf32, #tpu.memory_space<vmem>>, vector<8x128xf32>
    tpu.vector_store %arg3[%765, %c0_203], %764 {strides = array<i32>} : memref<8x128xf32, #tpu.memory_space<vmem>>, vector<8x128xf32>,
    %767 = arith.addf %0, %764 : vector<8x128xf32>
    %768 = arith.mulf %764, %764 : vector<8x128xf32>
    %769 = arith.addf %0, %768 : vector<8x128xf32>
    %c1_i32_204 = arith.constant 1 : i32
    %770 = vector.shape_cast %767 : vector<8x128xf32> to vector<1x8x128xf32>
    %cst_205 = arith.constant dense<0.000000e+00> : vector<1xf32>
    %771 = vector.multi_reduction <add>, %770, %cst_205 [1, 2] : vector<1x8x128xf32> to vector<1xf32>
    %772 = vector.shape_cast %771 : vector<1xf32> to vector<1x1x1xf32>
    %773 = vector.extract %772[0, 0, 0] : f32 from vector<1x1x1xf32>
    %774 = vector.shape_cast %769 : vector<8x128xf32> to vector<1x8x128xf32>
    %cst_206 = arith.constant dense<0.000000e+00> : vector<1xf32>
    %775 = vector.multi_reduction <add>, %774, %cst_206 [1, 2] : vector<1x8x128xf32> to vector<1xf32>
    %776 = vector.shape_cast %775 : vector<1xf32> to vector<1x1x1xf32>
    %777 = vector.extract %776[0, 0, 0] : f32 from vector<1x1x1xf32>
    %cst_207 = arith.constant 9.765625E-4 : f32
    %778 = arith.mulf %773, %cst_207 : f32
    %cst_208 = arith.constant 9.765625E-4 : f32
    %779 = arith.mulf %777, %cst_208 : f32
    %780 = arith.mulf %778, %778 : f32
    %781 = arith.subf %779, %780 : f32
    %cst_209 = arith.constant 0.000000e+00 : f32
    %782 = arith.maximumf %781, %cst_209 : f32
    %783 = arith.mulf %731, %730 : f32
    %784 = arith.mulf %730, %730 : f32
    %785 = arith.mulf %784, %782 : f32
    %cst_210 = arith.constant 9.99999974E-6 : f32
    %786 = arith.addf %785, %cst_210 : f32
    %787 = math.rsqrt %786 : f32
    %788 = arith.mulf %783, %787 : f32
    %789 = arith.mulf %788, %778 : f32
    %790 = arith.subf %732, %789 : f32
    %c0_i32_211 = arith.constant 0 : i32
    %c8_i32_212 = arith.constant 8 : i32
    %791 = arith.muli %c0_i32_211, %c8_i32_212 : i32
    %792 = tpu.assume_multiple %791, 8 : i32
    %793 = arith.index_cast %792 : i32 to index
    %c0_213 = arith.constant 0 : index
    %794 = vector.load %arg2[%793, %c0_213] : memref<8x128xf32, #tpu.memory_space<vmem>>, vector<8x128xf32>
    %795 = arith.index_cast %792 : i32 to index
    %c0_214 = arith.constant 0 : index
    %796 = vector.load %arg3[%795, %c0_214] : memref<8x128xf32, #tpu.memory_space<vmem>>, vector<8x128xf32>
    %797 = vector.broadcast %788 : f32 to vector<8x128xf32>
    %798 = arith.mulf %797, %796 : vector<8x128xf32>
    %799 = arith.addf %794, %798 : vector<8x128xf32>
    %800 = vector.broadcast %790 : f32 to vector<8x128xf32>
    %801 = arith.addf %799, %800 : vector<8x128xf32>
    %cst_215 = arith.constant 5.000000e-01 : f32
    %802 = vector.broadcast %cst_215 : f32 to vector<8x128xf32>
    %803 = arith.mulf %802, %801 : vector<8x128xf32>
    %804 = math.tanh %803 : vector<8x128xf32>
    %cst_216 = arith.constant 5.000000e-01 : f32
    %805 = vector.broadcast %cst_216 : f32 to vector<8x128xf32>
    %806 = arith.mulf %805, %804 : vector<8x128xf32>
    %cst_217 = arith.constant 5.000000e-01 : f32
    %807 = vector.broadcast %cst_217 : f32 to vector<8x128xf32>
    %808 = arith.addf %806, %807 : vector<8x128xf32>
    %809 = arith.index_cast %792 : i32 to index
    %c0_218 = arith.constant 0 : index
    %810 = vector.load %arg2[%809, %c0_218] : memref<8x128xf32, #tpu.memory_space<vmem>>, vector<8x128xf32>
    tpu.vector_store %arg2[%809, %c0_218], %808 {strides = array<i32>} : memref<8x128xf32, #tpu.memory_space<vmem>>, vector<8x128xf32>,
    %c1_i32_219 = arith.constant 1 : i32
    return
  }
}

</mosaic_0001>

<llo_original>
// kernel: tpu_custom_call.1
$region0: #{tpu_custom_call.1}
  #allocation0 [shape = 'u32[]', space=smem, size = 0x4, offset = 0x4, fixed_abs, tag = 'smem constant byte address 0x4 - core index']
  #allocation1 [shape = 'u32[144,128]{1,0:T(1,128)}', space=vmem, size = 0x12000, scoped, tag = 'internal scratch']
  #allocation2 [shape = 'f32[8,128]{1,0:T(8,128)}', space=vmem, size = 0x1000, scoped, tag = 'scratch operand']
  %s0 = inlined_call_operand.hbm [shape: f32[63], index: 0, kind: input, shape index: {}]
  %s1 = inlined_call_operand.hbm [shape: f32[8,128], index: 1, kind: input, shape index: {}]
  %s2 = inlined_call_operand.hbm [shape: f32[8,128], index: 2, kind: output, shape index: {}]
  %s3 = sld [smem:[#allocation0]]
  $region26: #{tpu_custom_call.1} parent=0
    _
  %s5 = ssub.s32 1, %s3
  %s6 = scalar_select 0, %s5, %s3
  $region1: #{tpu_custom_call.1} parent=0
    #allocation3 [shape = 'u8[512]{0}', space=smem, size = 0x200, scoped, tag = 'input window, operand 0, single buffered']
    #allocation4 [shape = 's32[1]{0}', space=sflag, size = 0x4, scoped, tag = 'scoped memory for tpu_custom_call.1']
    #allocation5 [shape = 's32[1]{0}', space=sflag, size = 0x4, scoped, tag = 'scoped memory for tpu_custom_call.1']
    #allocation6 [shape = 's32[1]{0}', space=sflag, size = 0x4, scoped, tag = 'scoped memory for tpu_custom_call.1']
    #allocation7 [shape = 'u8[4096]{0}', space=vmem, size = 0x1000, scoped, tag = 'input window, operand 1, single buffered']
    #allocation8 [shape = 'u8[4096]{0}', space=vmem, size = 0x1000, scoped, tag = 'output window, operand 0, single buffered']
    %7 = vsyncpa [#allocation6], 0
    %8 = vsyncpa [#allocation4], 0
    %9 = vsyncpa [#allocation5], 0
    // Predicated region
    $region2: #{tpu_custom_call.1} parent=1 // pred_check
      _
    $region3: #{tpu_custom_call.1} parent=1 // pred_check_branch
      %11 = sbr.rel (0) target = $region5
    $region4: #{tpu_custom_call.1} parent=1 // pred_region
      %s13 = ssub.s32 16, 16
      %14 = vsyncadd [#allocation6], %s13
      %17 = dma.hbm_to_smem %s0, 16, [#allocation3], [#allocation6]
    $region5: #{tpu_custom_call.1} parent=1 // pred_fallthru
      _
    // Predicated region
    $region6: #{tpu_custom_call.1} parent=1 // pred_check
      _
    $region7: #{tpu_custom_call.1} parent=1 // pred_check_branch
      %19 = sbr.rel (0) target = $region9
    $region8: #{tpu_custom_call.1} parent=1 // pred_region
      %s21 = ssub.s32 128, 128
      %22 = vsyncadd [#allocation4], %s21
      %s24 = sshll.u32 [#allocation7], 4
      %s25 = int_to_ptr.vmem [resolvable:$true] %s24
      %27 = dma.hbm_to_vmem [thread:$0]  %s1, 128, %s25, [#allocation4]
    $region9: #{tpu_custom_call.1} parent=1 // pred_fallthru
      _
    // Predicated region
    $region10: #{tpu_custom_call.1} parent=1 // pred_check
      _
    $region11: #{tpu_custom_call.1} parent=1 // pred_check_branch
      %29 = sbr.rel (0) target = $region13
    $region12: #{tpu_custom_call.1} parent=1 // pred_region
      %30 = dma.done [#allocation6], 16
    $region13: #{tpu_custom_call.1} parent=1 // pred_fallthru
      _
    // Predicated region
    $region14: #{tpu_custom_call.1} parent=1 // pred_check
      _
    $region15: #{tpu_custom_call.1} parent=1 // pred_check_branch
      %32 = sbr.rel (0) target = $region17
    $region16: #{tpu_custom_call.1} parent=1 // pred_region
      %33 = dma.done [#allocation4], 128
    $region17: #{tpu_custom_call.1} parent=1 // pred_fallthru
      _
    %34 = sfence
    %v35 = vld [vmem:[#allocation7] sm:$0xff]
    %v36 = vadd.f32 %v35, 0.0
    %v37 = vmul.f32 %v35, %v35
    %v38 = vadd.f32 %v37, 0.0
    %39 = vadd.xlane.f32.xlu0 %v36
    %v40 = vpop.xlane.xlu0 %39
    %v41 = vrot.slane %v40, 4
    %v42 = vadd.f32 %v40, %v41
    %v43 = vrot.slane %v42, 2
    %v44 = vadd.f32 %v42, %v43
    %v45 = vrot.slane %v44, 1
    %v46 = vadd.f32 %v44, %v45
    %s47 = vtos %v46
    %48 = vadd.xlane.f32.xlu0 %v38
    %v49 = vpop.xlane.xlu0 %48
    %v50 = vrot.slane %v49, 4
    %v51 = vadd.f32 %v49, %v50
    %v52 = vrot.slane %v51, 2
    %v53 = vadd.f32 %v51, %v52
    %v54 = vrot.slane %v53, 1
    %v55 = vadd.f32 %v53, %v54
    %s56 = vtos %v55
    %s57 = sld [smem:[#allocation3]]
    %s58 = sld [smem:[#allocation3 + $0x1]]
    %s59 = sld [smem:[#allocation3 + $0x2]]
    %s60 = sld [smem:[#allocation3 + $0x3]]
    %s61 = sld [smem:[#allocation3 + $0x5]]
    %s62 = sld [smem:[#allocation3 + $0x6]]
    %s63 = smul.f32 %s47, 0.0009765625
    %s64 = smul.f32 %s56, 0.0009765625
    %s65 = smul.f32 %s63, %s63
    %s66 = ssub.f32 %s64, %s65
    %s67 = smax.f32 %s66, 0.0
    %s68 = smul.f32 %s58, %s57
    %s69 = smul.f32 %s57, %s57
    %s70 = smul.f32 %s69, %s67
    %s71 = sadd.f32 %s70, 1e-05
    %v72 = vstv %s71
    %v73 = vrsqrt.pop %v72
    %s74 = vtos %v73
    %s75 = smul.f32 %s68, %s74
    %s76 = smul.f32 %s75, %s63
    %s77 = ssub.f32 %s59, %s76
    %v78 = vstv %s75
    %v79 = vmul.f32 %v78, %v35
    %v80 = vstv %s77
    %v81 = vadd.f32 %v79, %v80
    %v82 = vmax.f32 %v81, 0.0
    %83 = vst [vmem:[#allocation2] sm:$0xff] %v82
    %v84 = vadd.f32 %v82, 0.0
    %v85 = vmul.f32 %v82, %v82
    %v86 = vadd.f32 %v85, 0.0
    %v87 = vmul.f32 %v35, %v82
    %v88 = vadd.f32 %v87, 0.0
    %89 = vadd.xlane.f32.xlu0 %v84
    %v90 = vpop.xlane.xlu0 %89
    %v91 = vrot.slane %v90, 4
    %v92 = vadd.f32 %v90, %v91
    %v93 = vrot.slane %v92, 2
    %v94 = vadd.f32 %v92, %v93
    %v95 = vrot.slane %v94, 1
    %v96 = vadd.f32 %v94, %v95
    %s97 = vtos %v96
    %98 = vadd.xlane.f32.xlu0 %v86
    %v99 = vpop.xlane.xlu0 %98
    %v100 = vrot.slane %v99, 4
    %v101 = vadd.f32 %v99, %v100
    %v102 = vrot.slane %v101, 2
    %v103 = vadd.f32 %v101, %v102
    %v104 = vrot.slane %v103, 1
    %v105 = vadd.f32 %v103, %v104
    %s106 = vtos %v105
    %107 = vadd.xlane.f32.xlu0 %v88
    %v108 = vpop.xlane.xlu0 %107
    %v109 = vrot.slane %v108, 4
    %v110 = vadd.f32 %v108, %v109
    %v111 = vrot.slane %v110, 2
    %v112 = vadd.f32 %v110, %v111
    %v113 = vrot.slane %v112, 1
    %v114 = vadd.f32 %v112, %v113
    %s115 = vtos %v114
    %s116 = smul.f32 %s97, 0.0009765625
    %s117 = smul.f32 %s106, 0.0009765625
    %s118 = smul.f32 %s116, %s116
    %s119 = ssub.f32 %s117, %s118
    %s120 = smax.f32 %s119, 0.0
    %s121 = smul.f32 %s61, %s60
    %s122 = smul.f32 %s60, %s60
    %s123 = smul.f32 %s122, %s120
    %s124 = sadd.f32 %s123, 1e-05
    %v125 = vstv %s124
    %v126 = vrsqrt.pop %v125
    %s127 = vtos %v126
    %s128 = smul.f32 %s121, %s127
    %s129 = smul.f32 %s128, %s116
    %s130 = ssub.f32 %s62, %s129
    %s131 = smul.f32 %s128, %s97
    %s132 = sadd.f32 %s47, %s131
    %s133 = smul.f32 %s130, 1024.0
    %s134 = sadd.f32 %s132, %s133
    %s135 = smul.f32 %s128, %s128
    %s136 = smul.f32 %s135, %s106
    %s137 = sadd.f32 %s56, %s136
    %s138 = smul.f32 %s133, %s130
    %s139 = sadd.f32 %s137, %s138
    %s140 = smul.f32 %s128, 2.0
    %s141 = smul.f32 %s140, %s115
    %s142 = sadd.f32 %s139, %s141
    %s143 = smul.f32 %s130, 2.0
    %s144 = smul.f32 %s143, %s47
    %s145 = sadd.f32 %s142, %s144
    %s146 = smul.f32 %s140, %s130
    %s147 = smul.f32 %s146, %s97
    %s148 = sadd.f32 %s145, %s147
    %s149 = sld [smem:[#allocation3 + $0x7]]
    %s150 = sld [smem:[#allocation3 + $0x8]]
    %s151 = sld [smem:[#allocation3 + $0x9]]
    %s152 = sld [smem:[#allocation3 + $0xa]]
    %s153 = sld [smem:[#allocation3 + $0xc]]
    %s154 = sld [smem:[#allocation3 + $0xd]]
    %s155 = smul.f32 %s134, 0.0009765625
    %s156 = smul.f32 %s148, 0.0009765625
    %s157 = smul.f32 %s155, %s155
    %s158 = ssub.f32 %s156, %s157
    %s159 = smax.f32 %s158, 0.0
    %s160 = smul.f32 %s150, %s149
    %s161 = smul.f32 %s149, %s149
    %s162 = smul.f32 %s161, %s159
    %s163 = sadd.f32 %s162, 1e-05
    %v164 = vstv %s163
    %v165 = vrsqrt.pop %v164
    %s166 = vtos %v165
    %s167 = smul.f32 %s160, %s166
    %s168 = smul.f32 %s167, %s155
    %s169 = ssub.f32 %s151, %s168
    %v170 = vld [vmem:[#allocation7] sm:$0xff]
    %v171 = vld [vmem:[#allocation2] sm:$0xff]
    %v172 = vstv %s128
    %v173 = vmul.f32 %v172, %v171
    %v174 = vadd.f32 %v170, %v173
    %v175 = vstv %s130
    %v176 = vadd.f32 %v174, %v175
    %177 = vst [vmem:[#allocation8] sm:$0xff] %v176
    %v178 = vstv %s167
    %v179 = vmul.f32 %v178, %v176
    %v180 = vstv %s169
    %v181 = vadd.f32 %v179, %v180
    %v182 = vmax.f32 %v181, 0.0
    %183 = vst [vmem:[#allocation2] sm:$0xff] %v182
    %v184 = vadd.f32 %v182, 0.0
    %v185 = vmul.f32 %v182, %v182
    %v186 = vadd.f32 %v185, 0.0
    %v187 = vmul.f32 %v176, %v182
    %v188 = vadd.f32 %v187, 0.0
    %189 = vadd.xlane.f32.xlu0 %v184
    %v190 = vpop.xlane.xlu0 %189
    %v191 = vrot.slane %v190, 4
    %v192 = vadd.f32 %v190, %v191
    %v193 = vrot.slane %v192, 2
    %v194 = vadd.f32 %v192, %v193
    %v195 = vrot.slane %v194, 1
    %v196 = vadd.f32 %v194, %v195
    %s197 = vtos %v196
    %198 = vadd.xlane.f32.xlu0 %v186
    %v199 = vpop.xlane.xlu0 %198
    %v200 = vrot.slane %v199, 4
    %v201 = vadd.f32 %v199, %v200
    %v202 = vrot.slane %v201, 2
    %v203 = vadd.f32 %v201, %v202
    %v204 = vrot.slane %v203, 1
    %v205 = vadd.f32 %v203, %v204
    %s206 = vtos %v205
    %207 = vadd.xlane.f32.xlu0 %v188
    %v208 = vpop.xlane.xlu0 %207
    %v209 = vrot.slane %v208, 4
    %v210 = vadd.f32 %v208, %v209
    %v211 = vrot.slane %v210, 2
    %v212 = vadd.f32 %v210, %v211
    %v213 = vrot.slane %v212, 1
    %v214 = vadd.f32 %v212, %v213
    %s215 = vtos %v214
    %s216 = smul.f32 %s197, 0.0009765625
    %s217 = smul.f32 %s206, 0.0009765625
    %s218 = smul.f32 %s216, %s216
    %s219 = ssub.f32 %s217, %s218
    %s220 = smax.f32 %s219, 0.0
    %s221 = smul.f32 %s153, %s152
    %s222 = smul.f32 %s152, %s152
    %s223 = smul.f32 %s222, %s220
    %s224 = sadd.f32 %s223, 1e-05
    %v225 = vstv %s224
    %v226 = vrsqrt.pop %v225
    %s227 = vtos %v226
    %s228 = smul.f32 %s221, %s227
    %s229 = smul.f32 %s228, %s216
    %s230 = ssub.f32 %s154, %s229
    %s231 = smul.f32 %s228, %s197
    %s232 = sadd.f32 %s134, %s231
    %s233 = smul.f32 %s230, 1024.0
    %s234 = sadd.f32 %s232, %s233
    %s235 = smul.f32 %s228, %s228
    %s236 = smul.f32 %s235, %s206
    %s237 = sadd.f32 %s148, %s236
    %s238 = smul.f32 %s233, %s230
    %s239 = sadd.f32 %s237, %s238
    %s240 = smul.f32 %s228, 2.0
    %s241 = smul.f32 %s240, %s215
    %s242 = sadd.f32 %s239, %s241
    %s243 = smul.f32 %s230, 2.0
    %s244 = smul.f32 %s243, %s134
    %s245 = sadd.f32 %s242, %s244
    %s246 = smul.f32 %s240, %s230
    %s247 = smul.f32 %s246, %s197
    %s248 = sadd.f32 %s245, %s247
    %s249 = sld [smem:[#allocation3 + $0xe]]
    %s250 = sld [smem:[#allocation3 + $0xf]]
    %s251 = sld [smem:[#allocation3 + $0x10]]
    %s252 = sld [smem:[#allocation3 + $0x11]]
    %s253 = sld [smem:[#allocation3 + $0x13]]
    %s254 = sld [smem:[#allocation3 + $0x14]]
    %s255 = smul.f32 %s234, 0.0009765625
    %s256 = smul.f32 %s248, 0.0009765625
    %s257 = smul.f32 %s255, %s255
    %s258 = ssub.f32 %s256, %s257
    %s259 = smax.f32 %s258, 0.0
    %s260 = smul.f32 %s250, %s249
    %s261 = smul.f32 %s249, %s249
    %s262 = smul.f32 %s261, %s259
    %s263 = sadd.f32 %s262, 1e-05
    %v264 = vstv %s263
    %v265 = vrsqrt.pop %v264
    %s266 = vtos %v265
    %s267 = smul.f32 %s260, %s266
    %s268 = smul.f32 %s267, %s255
    %s269 = ssub.f32 %s251, %s268
    %v270 = vld [vmem:[#allocation8] sm:$0xff]
    %v271 = vld [vmem:[#allocation2] sm:$0xff]
    %v272 = vstv %s228
    %v273 = vmul.f32 %v272, %v271
    %v274 = vadd.f32 %v270, %v273
    %v275 = vstv %s230
    %v276 = vadd.f32 %v274, %v275
    %277 = vst [vmem:[#allocation8] sm:$0xff] %v276
    %v278 = vstv %s267
    %v279 = vmul.f32 %v278, %v276
    %v280 = vstv %s269
    %v281 = vadd.f32 %v279, %v280
    %v282 = vmax.f32 %v281, 0.0
    %283 = vst [vmem:[#allocation2] sm:$0xff] %v282
    %v284 = vadd.f32 %v282, 0.0
    %v285 = vmul.f32 %v282, %v282
    %v286 = vadd.f32 %v285, 0.0
    %v287 = vmul.f32 %v276, %v282
    %v288 = vadd.f32 %v287, 0.0
    %289 = vadd.xlane.f32.xlu0 %v284
    %v290 = vpop.xlane.xlu0 %289
    %v291 = vrot.slane %v290, 4
    %v292 = vadd.f32 %v290, %v291
    %v293 = vrot.slane %v292, 2
    %v294 = vadd.f32 %v292, %v293
    %v295 = vrot.slane %v294, 1
    %v296 = vadd.f32 %v294, %v295
    %s297 = vtos %v296
    %298 = vadd.xlane.f32.xlu0 %v286
    %v299 = vpop.xlane.xlu0 %298
    %v300 = vrot.slane %v299, 4
    %v301 = vadd.f32 %v299, %v300
    %v302 = vrot.slane %v301, 2
    %v303 = vadd.f32 %v301, %v302
    %v304 = vrot.slane %v303, 1
    %v305 = vadd.f32 %v303, %v304
    %s306 = vtos %v305
    %307 = vadd.xlane.f32.xlu0 %v288
    %v308 = vpop.xlane.xlu0 %307
    %v309 = vrot.slane %v308, 4
    %v310 = vadd.f32 %v308, %v309
    %v311 = vrot.slane %v310, 2
    %v312 = vadd.f32 %v310, %v311
    %v313 = vrot.slane %v312, 1
    %v314 = vadd.f32 %v312, %v313
    %s315 = vtos %v314
    %s316 = smul.f32 %s297, 0.0009765625
    %s317 = smul.f32 %s306, 0.0009765625
    %s318 = smul.f32 %s316, %s316
    %s319 = ssub.f32 %s317, %s318
    %s320 = smax.f32 %s319, 0.0
    %s321 = smul.f32 %s253, %s252
    %s322 = smul.f32 %s252, %s252
    %s323 = smul.f32 %s322, %s320
    %s324 = sadd.f32 %s323, 1e-05
    %v325 = vstv %s324
    %v326 = vrsqrt.pop %v325
    %s327 = vtos %v326
    %s328 = smul.f32 %s321, %s327
    %s329 = smul.f32 %s328, %s316
    %s330 = ssub.f32 %s254, %s329
    %s331 = smul.f32 %s328, %s297
    %s332 = sadd.f32 %s234, %s331
    %s333 = smul.f32 %s330, 1024.0
    %s334 = sadd.f32 %s332, %s333
    %s335 = smul.f32 %s328, %s328
    %s336 = smul.f32 %s335, %s306
    %s337 = sadd.f32 %s248, %s336
    %s338 = smul.f32 %s333, %s330
    %s339 = sadd.f32 %s337, %s338
    %s340 = smul.f32 %s328, 2.0
    %s341 = smul.f32 %s340, %s315
    %s342 = sadd.f32 %s339, %s341
    %s343 = smul.f32 %s330, 2.0
    %s344 = smul.f32 %s343, %s234
    %s345 = sadd.f32 %s342, %s344
    %s346 = smul.f32 %s340, %s330
    %s347 = smul.f32 %s346, %s297
    %s348 = sadd.f32 %s345, %s347
    %s349 = sld [smem:[#allocation3 + $0x15]]
    %s350 = sld [smem:[#allocation3 + $0x16]]
    %s351 = sld [smem:[#allocation3 + $0x17]]
    %s352 = sld [smem:[#allocation3 + $0x18]]
    %s353 = sld [smem:[#allocation3 + $0x1a]]
    %s354 = sld [smem:[#allocation3 + $0x1b]]
    %s355 = smul.f32 %s334, 0.0009765625
    %s356 = smul.f32 %s348, 0.0009765625
    %s357 = smul.f32 %s355, %s355
    %s358 = ssub.f32 %s356, %s357
    %s359 = smax.f32 %s358, 0.0
    %s360 = smul.f32 %s350, %s349
    %s361 = smul.f32 %s349, %s349
    %s362 = smul.f32 %s361, %s359
    %s363 = sadd.f32 %s362, 1e-05
    %v364 = vstv %s363
    %v365 = vrsqrt.pop %v364
    %s366 = vtos %v365
    %s367 = smul.f32 %s360, %s366
    %s368 = smul.f32 %s367, %s355
    %s369 = ssub.f32 %s351, %s368
    %v370 = vld [vmem:[#allocation8] sm:$0xff]
    %v371 = vld [vmem:[#allocation2] sm:$0xff]
    %v372 = vstv %s328
    %v373 = vmul.f32 %v372, %v371
    %v374 = vadd.f32 %v370, %v373
    %v375 = vstv %s330
    %v376 = vadd.f32 %v374, %v375
    %377 = vst [vmem:[#allocation8] sm:$0xff] %v376
    %v378 = vstv %s367
    %v379 = vmul.f32 %v378, %v376
    %v380 = vstv %s369
    %v381 = vadd.f32 %v379, %v380
    %v382 = vmax.f32 %v381, 0.0
    %383 = vst [vmem:[#allocation2] sm:$0xff] %v382
    %v384 = vadd.f32 %v382, 0.0
    %v385 = vmul.f32 %v382, %v382
    %v386 = vadd.f32 %v385, 0.0
    %v387 = vmul.f32 %v376, %v382
    %v388 = vadd.f32 %v387, 0.0
    %389 = vadd.xlane.f32.xlu0 %v384
    %v390 = vpop.xlane.xlu0 %389
    %v391 = vrot.slane %v390, 4
    %v392 = vadd.f32 %v390, %v391
    %v393 = vrot.slane %v392, 2
    %v394 = vadd.f32 %v392, %v393
    %v395 = vrot.slane %v394, 1
    %v396 = vadd.f32 %v394, %v395
    %s397 = vtos %v396
    %398 = vadd.xlane.f32.xlu0 %v386
    %v399 = vpop.xlane.xlu0 %398
    %v400 = vrot.slane %v399, 4
    %v401 = vadd.f32 %v399, %v400
    %v402 = vrot.slane %v401, 2
    %v403 = vadd.f32 %v401, %v402
    %v404 = vrot.slane %v403, 1
    %v405 = vadd.f32 %v403, %v404
    %s406 = vtos %v405
    %407 = vadd.xlane.f32.xlu0 %v388
    %v408 = vpop.xlane.xlu0 %407
    %v409 = vrot.slane %v408, 4
    %v410 = vadd.f32 %v408, %v409
    %v411 = vrot.slane %v410, 2
    %v412 = vadd.f32 %v410, %v411
    %v413 = vrot.slane %v412, 1
    %v414 = vadd.f32 %v412, %v413
    %s415 = vtos %v414
    %s416 = smul.f32 %s397, 0.0009765625
    %s417 = smul.f32 %s406, 0.0009765625
    %s418 = smul.f32 %s416, %s416
    %s419 = ssub.f32 %s417, %s418
    %s420 = smax.f32 %s419, 0.0
    %s421 = smul.f32 %s353, %s352
    %s422 = smul.f32 %s352, %s352
    %s423 = smul.f32 %s422, %s420
    %s424 = sadd.f32 %s423, 1e-05
    %v425 = vstv %s424
    %v426 = vrsqrt.pop %v425
    %s427 = vtos %v426
    %s428 = smul.f32 %s421, %s427
    %s429 = smul.f32 %s428, %s416
    %s430 = ssub.f32 %s354, %s429
    %s431 = smul.f32 %s428, %s397
    %s432 = sadd.f32 %s334, %s431
    %s433 = smul.f32 %s430, 1024.0
    %s434 = sadd.f32 %s432, %s433
    %s435 = smul.f32 %s428, %s428
    %s436 = smul.f32 %s435, %s406
    %s437 = sadd.f32 %s348, %s436
    %s438 = smul.f32 %s433, %s430
    %s439 = sadd.f32 %s437, %s438
    %s440 = smul.f32 %s428, 2.0
    %s441 = smul.f32 %s440, %s415
    %s442 = sadd.f32 %s439, %s441
    %s443 = smul.f32 %s430, 2.0
    %s444 = smul.f32 %s443, %s334
    %s445 = sadd.f32 %s442, %s444
    %s446 = smul.f32 %s440, %s430
    %s447 = smul.f32 %s446, %s397
    %s448 = sadd.f32 %s445, %s447
    %s449 = sld [smem:[#allocation3 + $0x1c]]
    %s450 = sld [smem:[#allocation3 + $0x1d]]
    %s451 = sld [smem:[#allocation3 + $0x1e]]
    %s452 = sld [smem:[#allocation3 + $0x1f]]
    %s453 = sld [smem:[#allocation3 + $0x21]]
    %s454 = sld [smem:[#allocation3 + $0x22]]
    %s455 = smul.f32 %s434, 0.0009765625
    %s456 = smul.f32 %s448, 0.0009765625
    %s457 = smul.f32 %s455, %s455
    %s458 = ssub.f32 %s456, %s457
    %s459 = smax.f32 %s458, 0.0
    %s460 = smul.f32 %s450, %s449
    %s461 = smul.f32 %s449, %s449
    %s462 = smul.f32 %s461, %s459
    %s463 = sadd.f32 %s462, 1e-05
    %v464 = vstv %s463
    %v465 = vrsqrt.pop %v464
    %s466 = vtos %v465
    %s467 = smul.f32 %s460, %s466
    %s468 = smul.f32 %s467, %s455
    %s469 = ssub.f32 %s451, %s468
    %v470 = vld [vmem:[#allocation8] sm:$0xff]
    %v471 = vld [vmem:[#allocation2] sm:$0xff]
    %v472 = vstv %s428
    %v473 = vmul.f32 %v472, %v471
    %v474 = vadd.f32 %v470, %v473
    %v475 = vstv %s430
    %v476 = vadd.f32 %v474, %v475
    %477 = vst [vmem:[#allocation8] sm:$0xff] %v476
    %v478 = vstv %s467
    %v479 = vmul.f32 %v478, %v476
    %v480 = vstv %s469
    %v481 = vadd.f32 %v479, %v480
    %v482 = vmax.f32 %v481, 0.0
    %483 = vst [vmem:[#allocation2] sm:$0xff] %v482
    %v484 = vadd.f32 %v482, 0.0
    %v485 = vmul.f32 %v482, %v482
    %v486 = vadd.f32 %v485, 0.0
    %v487 = vmul.f32 %v476, %v482
    %v488 = vadd.f32 %v487, 0.0
    %489 = vadd.xlane.f32.xlu0 %v484
    %v490 = vpop.xlane.xlu0 %489
    %v491 = vrot.slane %v490, 4
    %v492 = vadd.f32 %v490, %v491
    %v493 = vrot.slane %v492, 2
    %v494 = vadd.f32 %v492, %v493
    %v495 = vrot.slane %v494, 1
    %v496 = vadd.f32 %v494, %v495
    %s497 = vtos %v496
    %498 = vadd.xlane.f32.xlu0 %v486
    %v499 = vpop.xlane.xlu0 %498
    %v500 = vrot.slane %v499, 4
    %v501 = vadd.f32 %v499, %v500
    %v502 = vrot.slane %v501, 2
    %v503 = vadd.f32 %v501, %v502
    %v504 = vrot.slane %v503, 1
    %v505 = vadd.f32 %v503, %v504
    %s506 = vtos %v505
    %507 = vadd.xlane.f32.xlu0 %v488
    %v508 = vpop.xlane.xlu0 %507
    %v509 = vrot.slane %v508, 4
    %v510 = vadd.f32 %v508, %v509
    %v511 = vrot.slane %v510, 2
    %v512 = vadd.f32 %v510, %v511
    %v513 = vrot.slane %v512, 1
    %v514 = vadd.f32 %v512, %v513
    %s515 = vtos %v514
    %s516 = smul.f32 %s497, 0.0009765625
    %s517 = smul.f32 %s506, 0.0009765625
    %s518 = smul.f32 %s516, %s516
    %s519 = ssub.f32 %s517, %s518
    %s520 = smax.f32 %s519, 0.0
    %s521 = smul.f32 %s453, %s452
    %s522 = smul.f32 %s452, %s452
    %s523 = smul.f32 %s522, %s520
    %s524 = sadd.f32 %s523, 1e-05
    %v525 = vstv %s524
    %v526 = vrsqrt.pop %v525
    %s527 = vtos %v526
    %s528 = smul.f32 %s521, %s527
    %s529 = smul.f32 %s528, %s516
    %s530 = ssub.f32 %s454, %s529
    %s531 = smul.f32 %s528, %s497
    %s532 = sadd.f32 %s434, %s531
    %s533 = smul.f32 %s530, 1024.0
    %s534 = sadd.f32 %s532, %s533
    %s535 = smul.f32 %s528, %s528
    %s536 = smul.f32 %s535, %s506
    %s537 = sadd.f32 %s448, %s536
    %s538 = smul.f32 %s533, %s530
    %s539 = sadd.f32 %s537, %s538
    %s540 = smul.f32 %s528, 2.0
    %s541 = smul.f32 %s540, %s515
    %s542 = sadd.f32 %s539, %s541
    %s543 = smul.f32 %s530, 2.0
    %s544 = smul.f32 %s543, %s434
    %s545 = sadd.f32 %s542, %s544
    %s546 = smul.f32 %s540, %s530
    %s547 = smul.f32 %s546, %s497
    %s548 = sadd.f32 %s545, %s547
    %s549 = sld [smem:[#allocation3 + $0x23]]
    %s550 = sld [smem:[#allocation3 + $0x24]]
    %s551 = sld [smem:[#allocation3 + $0x25]]
    %s552 = sld [smem:[#allocation3 + $0x26]]
    %s553 = sld [smem:[#allocation3 + $0x28]]
    %s554 = sld [smem:[#allocation3 + $0x29]]
    %s555 = smul.f32 %s534, 0.0009765625
    %s556 = smul.f32 %s548, 0.0009765625
    %s557 = smul.f32 %s555, %s555
    %s558 = ssub.f32 %s556, %s557
    %s559 = smax.f32 %s558, 0.0
    %s560 = smul.f32 %s550, %s549
    %s561 = smul.f32 %s549, %s549
    %s562 = smul.f32 %s561, %s559
    %s563 = sadd.f32 %s562, 1e-05
    %v564 = vstv %s563
    %v565 = vrsqrt.pop %v564
    %s566 = vtos %v565
    %s567 = smul.f32 %s560, %s566
    %s568 = smul.f32 %s567, %s555
    %s569 = ssub.f32 %s551, %s568
    %v570 = vld [vmem:[#allocation8] sm:$0xff]
    %v571 = vld [vmem:[#allocation2] sm:$0xff]
    %v572 = vstv %s528
    %v573 = vmul.f32 %v572, %v571
    %v574 = vadd.f32 %v570, %v573
    %v575 = vstv %s530
    %v576 = vadd.f32 %v574, %v575
    %577 = vst [vmem:[#allocation8] sm:$0xff] %v576
    %v578 = vstv %s567
    %v579 = vmul.f32 %v578, %v576
    %v580 = vstv %s569
    %v581 = vadd.f32 %v579, %v580
    %v582 = vmax.f32 %v581, 0.0
    %583 = vst [vmem:[#allocation2] sm:$0xff] %v582
    %v584 = vadd.f32 %v582, 0.0
    %v585 = vmul.f32 %v582, %v582
    %v586 = vadd.f32 %v585, 0.0
    %v587 = vmul.f32 %v576, %v582
    %v588 = vadd.f32 %v587, 0.0
    %589 = vadd.xlane.f32.xlu0 %v584
    %v590 = vpop.xlane.xlu0 %589
    %v591 = vrot.slane %v590, 4
    %v592 = vadd.f32 %v590, %v591
    %v593 = vrot.slane %v592, 2
    %v594 = vadd.f32 %v592, %v593
    %v595 = vrot.slane %v594, 1
    %v596 = vadd.f32 %v594, %v595
    %s597 = vtos %v596
    %598 = vadd.xlane.f32.xlu0 %v586
    %v599 = vpop.xlane.xlu0 %598
    %v600 = vrot.slane %v599, 4
    %v601 = vadd.f32 %v599, %v600
    %v602 = vrot.slane %v601, 2
    %v603 = vadd.f32 %v601, %v602
    %v604 = vrot.slane %v603, 1
    %v605 = vadd.f32 %v603, %v604
    %s606 = vtos %v605
    %607 = vadd.xlane.f32.xlu0 %v588
    %v608 = vpop.xlane.xlu0 %607
    %v609 = vrot.slane %v608, 4
    %v610 = vadd.f32 %v608, %v609
    %v611 = vrot.slane %v610, 2
    %v612 = vadd.f32 %v610, %v611
    %v613 = vrot.slane %v612, 1
    %v614 = vadd.f32 %v612, %v613
    %s615 = vtos %v614
    %s616 = smul.f32 %s597, 0.0009765625
    %s617 = smul.f32 %s606, 0.0009765625
    %s618 = smul.f32 %s616, %s616
    %s619 = ssub.f32 %s617, %s618
    %s620 = smax.f32 %s619, 0.0
    %s621 = smul.f32 %s553, %s552
    %s622 = smul.f32 %s552, %s552
    %s623 = smul.f32 %s622, %s620
    %s624 = sadd.f32 %s623, 1e-05
    %v625 = vstv %s624
    %v626 = vrsqrt.pop %v625
    %s627 = vtos %v626
    %s628 = smul.f32 %s621, %s627
    %s629 = smul.f32 %s628, %s616
    %s630 = ssub.f32 %s554, %s629
    %s631 = smul.f32 %s628, %s597
    %s632 = sadd.f32 %s534, %s631
    %s633 = smul.f32 %s630, 1024.0
    %s634 = sadd.f32 %s632, %s633
    %s635 = smul.f32 %s628, %s628
    %s636 = smul.f32 %s635, %s606
    %s637 = sadd.f32 %s548, %s636
    %s638 = smul.f32 %s633, %s630
    %s639 = sadd.f32 %s637, %s638
    %s640 = smul.f32 %s628, 2.0
    %s641 = smul.f32 %s640, %s615
    %s642 = sadd.f32 %s639, %s641
    %s643 = smul.f32 %s630, 2.0
    %s644 = smul.f32 %s643, %s534
    %s645 = sadd.f32 %s642, %s644
    %s646 = smul.f32 %s640, %s630
    %s647 = smul.f32 %s646, %s597
    %s648 = sadd.f32 %s645, %s647
    %s649 = sld [smem:[#allocation3 + $0x2a]]
    %s650 = sld [smem:[#allocation3 + $0x2b]]
    %s651 = sld [smem:[#allocation3 + $0x2c]]
    %s652 = sld [smem:[#allocation3 + $0x2d]]
    %s653 = sld [smem:[#allocation3 + $0x2f]]
    %s654 = sld [smem:[#allocation3 + $0x30]]
    %s655 = smul.f32 %s634, 0.0009765625
    %s656 = smul.f32 %s648, 0.0009765625
    %s657 = smul.f32 %s655, %s655
    %s658 = ssub.f32 %s656, %s657
    %s659 = smax.f32 %s658, 0.0
    %s660 = smul.f32 %s650, %s649
    %s661 = smul.f32 %s649, %s649
    %s662 = smul.f32 %s661, %s659
    %s663 = sadd.f32 %s662, 1e-05
    %v664 = vstv %s663
    %v665 = vrsqrt.pop %v664
    %s666 = vtos %v665
    %s667 = smul.f32 %s660, %s666
    %s668 = smul.f32 %s667, %s655
    %s669 = ssub.f32 %s651, %s668
    %v670 = vld [vmem:[#allocation8] sm:$0xff]
    %v671 = vld [vmem:[#allocation2] sm:$0xff]
    %v672 = vstv %s628
    %v673 = vmul.f32 %v672, %v671
    %v674 = vadd.f32 %v670, %v673
    %v675 = vstv %s630
    %v676 = vadd.f32 %v674, %v675
    %677 = vst [vmem:[#allocation8] sm:$0xff] %v676
    %v678 = vstv %s667
    %v679 = vmul.f32 %v678, %v676
    %v680 = vstv %s669
    %v681 = vadd.f32 %v679, %v680
    %v682 = vmax.f32 %v681, 0.0
    %683 = vst [vmem:[#allocation2] sm:$0xff] %v682
    %v684 = vadd.f32 %v682, 0.0
    %v685 = vmul.f32 %v682, %v682
    %v686 = vadd.f32 %v685, 0.0
    %v687 = vmul.f32 %v676, %v682
    %v688 = vadd.f32 %v687, 0.0
    %689 = vadd.xlane.f32.xlu0 %v684
    %v690 = vpop.xlane.xlu0 %689
    %v691 = vrot.slane %v690, 4
    %v692 = vadd.f32 %v690, %v691
    %v693 = vrot.slane %v692, 2
    %v694 = vadd.f32 %v692, %v693
    %v695 = vrot.slane %v694, 1
    %v696 = vadd.f32 %v694, %v695
    %s697 = vtos %v696
    %698 = vadd.xlane.f32.xlu0 %v686
    %v699 = vpop.xlane.xlu0 %698
    %v700 = vrot.slane %v699, 4
    %v701 = vadd.f32 %v699, %v700
    %v702 = vrot.slane %v701, 2
    %v703 = vadd.f32 %v701, %v702
    %v704 = vrot.slane %v703, 1
    %v705 = vadd.f32 %v703, %v704
    %s706 = vtos %v705
    %707 = vadd.xlane.f32.xlu0 %v688
    %v708 = vpop.xlane.xlu0 %707
    %v709 = vrot.slane %v708, 4
    %v710 = vadd.f32 %v708, %v709
    %v711 = vrot.slane %v710, 2
    %v712 = vadd.f32 %v710, %v711
    %v713 = vrot.slane %v712, 1
    %v714 = vadd.f32 %v712, %v713
    %s715 = vtos %v714
    %s716 = smul.f32 %s697, 0.0009765625
    %s717 = smul.f32 %s706, 0.0009765625
    %s718 = smul.f32 %s716, %s716
    %s719 = ssub.f32 %s717, %s718
    %s720 = smax.f32 %s719, 0.0
    %s721 = smul.f32 %s653, %s652
    %s722 = smul.f32 %s652, %s652
    %s723 = smul.f32 %s722, %s720
    %s724 = sadd.f32 %s723, 1e-05
    %v725 = vstv %s724
    %v726 = vrsqrt.pop %v725
    %s727 = vtos %v726
    %s728 = smul.f32 %s721, %s727
    %s729 = smul.f32 %s728, %s716
    %s730 = ssub.f32 %s654, %s729
    %s731 = smul.f32 %s728, %s697
    %s732 = sadd.f32 %s634, %s731
    %s733 = smul.f32 %s730, 1024.0
    %s734 = sadd.f32 %s732, %s733
    %s735 = smul.f32 %s728, %s728
    %s736 = smul.f32 %s735, %s706
    %s737 = sadd.f32 %s648, %s736
    %s738 = smul.f32 %s733, %s730
    %s739 = sadd.f32 %s737, %s738
    %s740 = smul.f32 %s728, 2.0
    %s741 = smul.f32 %s740, %s715
    %s742 = sadd.f32 %s739, %s741
    %s743 = smul.f32 %s730, 2.0
    %s744 = smul.f32 %s743, %s634
    %s745 = sadd.f32 %s742, %s744
    %s746 = smul.f32 %s740, %s730
    %s747 = smul.f32 %s746, %s697
    %s748 = sadd.f32 %s745, %s747
    %s749 = sld [smem:[#allocation3 + $0x31]]
    %s750 = sld [smem:[#allocation3 + $0x32]]
    %s751 = sld [smem:[#allocation3 + $0x33]]
    %s752 = sld [smem:[#allocation3 + $0x34]]
    %s753 = sld [smem:[#allocation3 + $0x36]]
    %s754 = sld [smem:[#allocation3 + $0x37]]
    %s755 = smul.f32 %s734, 0.0009765625
    %s756 = smul.f32 %s748, 0.0009765625
    %s757 = smul.f32 %s755, %s755
    %s758 = ssub.f32 %s756, %s757
    %s759 = smax.f32 %s758, 0.0
    %s760 = smul.f32 %s750, %s749
    %s761 = smul.f32 %s749, %s749
    %s762 = smul.f32 %s761, %s759
    %s763 = sadd.f32 %s762, 1e-05
    %v764 = vstv %s763
    %v765 = vrsqrt.pop %v764
    %s766 = vtos %v765
    %s767 = smul.f32 %s760, %s766
    %s768 = smul.f32 %s767, %s755
    %s769 = ssub.f32 %s751, %s768
    %v770 = vld [vmem:[#allocation8] sm:$0xff]
    %v771 = vld [vmem:[#allocation2] sm:$0xff]
    %v772 = vstv %s728
    %v773 = vmul.f32 %v772, %v771
    %v774 = vadd.f32 %v770, %v773
    %v775 = vstv %s730
    %v776 = vadd.f32 %v774, %v775
    %777 = vst [vmem:[#allocation8] sm:$0xff] %v776
    %v778 = vstv %s767
    %v779 = vmul.f32 %v778, %v776
    %v780 = vstv %s769
    %v781 = vadd.f32 %v779, %v780
    %v782 = vmax.f32 %v781, 0.0
    %783 = vst [vmem:[#allocation2] sm:$0xff] %v782
    %v784 = vadd.f32 %v782, 0.0
    %v785 = vmul.f32 %v782, %v782
    %v786 = vadd.f32 %v785, 0.0
    %v787 = vmul.f32 %v776, %v782
    %v788 = vadd.f32 %v787, 0.0
    %789 = vadd.xlane.f32.xlu0 %v784
    %v790 = vpop.xlane.xlu0 %789
    %v791 = vrot.slane %v790, 4
    %v792 = vadd.f32 %v790, %v791
    %v793 = vrot.slane %v792, 2
    %v794 = vadd.f32 %v792, %v793
    %v795 = vrot.slane %v794, 1
    %v796 = vadd.f32 %v794, %v795
    %s797 = vtos %v796
    %798 = vadd.xlane.f32.xlu0 %v786
    %v799 = vpop.xlane.xlu0 %798
    %v800 = vrot.slane %v799, 4
    %v801 = vadd.f32 %v799, %v800
    %v802 = vrot.slane %v801, 2
    %v803 = vadd.f32 %v801, %v802
    %v804 = vrot.slane %v803, 1
    %v805 = vadd.f32 %v803, %v804
    %s806 = vtos %v805
    %807 = vadd.xlane.f32.xlu0 %v788
    %v808 = vpop.xlane.xlu0 %807
    %v809 = vrot.slane %v808, 4
    %v810 = vadd.f32 %v808, %v809
    %v811 = vrot.slane %v810, 2
    %v812 = vadd.f32 %v810, %v811
    %v813 = vrot.slane %v812, 1
    %v814 = vadd.f32 %v812, %v813
    %s815 = vtos %v814
    %s816 = smul.f32 %s797, 0.0009765625
    %s817 = smul.f32 %s806, 0.0009765625
    %s818 = smul.f32 %s816, %s816
    %s819 = ssub.f32 %s817, %s818
    %s820 = smax.f32 %s819, 0.0
    %s821 = smul.f32 %s753, %s752
    %s822 = smul.f32 %s752, %s752
    %s823 = smul.f32 %s822, %s820
    %s824 = sadd.f32 %s823, 1e-05
    %v825 = vstv %s824
    %v826 = vrsqrt.pop %v825
    %s827 = vtos %v826
    %s828 = smul.f32 %s821, %s827
    %s829 = smul.f32 %s828, %s816
    %s830 = ssub.f32 %s754, %s829
    %s831 = smul.f32 %s828, %s797
    %s832 = sadd.f32 %s734, %s831
    %s833 = smul.f32 %s830, 1024.0
    %s834 = sadd.f32 %s832, %s833
    %s835 = smul.f32 %s828, %s828
    %s836 = smul.f32 %s835, %s806
    %s837 = sadd.f32 %s748, %s836
    %s838 = smul.f32 %s833, %s830
    %s839 = sadd.f32 %s837, %s838
    %s840 = smul.f32 %s828, 2.0
    %s841 = smul.f32 %s840, %s815
    %s842 = sadd.f32 %s839, %s841
    %s843 = smul.f32 %s830, 2.0
    %s844 = smul.f32 %s843, %s734
    %s845 = sadd.f32 %s842, %s844
    %s846 = smul.f32 %s840, %s830
    %s847 = smul.f32 %s846, %s797
    %s848 = sadd.f32 %s845, %s847
    %s849 = sld [smem:[#allocation3 + $0x38]]
    %s850 = sld [smem:[#allocation3 + $0x39]]
    %s851 = sld [smem:[#allocation3 + $0x3a]]
    %s852 = sld [smem:[#allocation3 + $0x3b]]
    %s853 = sld [smem:[#allocation3 + $0x3d]]
    %s854 = sld [smem:[#allocation3 + $0x3e]]
    %s855 = smul.f32 %s834, 0.0009765625
    %s856 = smul.f32 %s848, 0.0009765625
    %s857 = smul.f32 %s855, %s855
    %s858 = ssub.f32 %s856, %s857
    %s859 = smax.f32 %s858, 0.0
    %s860 = smul.f32 %s850, %s849
    %s861 = smul.f32 %s849, %s849
    %s862 = smul.f32 %s861, %s859
    %s863 = sadd.f32 %s862, 1e-05
    %v864 = vstv %s863
    %v865 = vrsqrt.pop %v864
    %s866 = vtos %v865
    %s867 = smul.f32 %s860, %s866
    %s868 = smul.f32 %s867, %s855
    %s869 = ssub.f32 %s851, %s868
    %v870 = vld [vmem:[#allocation8] sm:$0xff]
    %v871 = vld [vmem:[#allocation2] sm:$0xff]
    %v872 = vstv %s828
    %v873 = vmul.f32 %v872, %v871
    %v874 = vadd.f32 %v870, %v873
    %v875 = vstv %s830
    %v876 = vadd.f32 %v874, %v875
    %877 = vst [vmem:[#allocation8] sm:$0xff] %v876
    %v878 = vstv %s867
    %v879 = vmul.f32 %v878, %v876
    %v880 = vstv %s869
    %v881 = vadd.f32 %v879, %v880
    %v882 = vmax.f32 %v881, 0.0
    %883 = vst [vmem:[#allocation2] sm:$0xff] %v882
    %v884 = vadd.f32 %v882, 0.0
    %v885 = vmul.f32 %v882, %v882
    %v886 = vadd.f32 %v885, 0.0
    %887 = vadd.xlane.f32.xlu0 %v884
    %v888 = vpop.xlane.xlu0 %887
    %v889 = vrot.slane %v888, 4
    %v890 = vadd.f32 %v888, %v889
    %v891 = vrot.slane %v890, 2
    %v892 = vadd.f32 %v890, %v891
    %v893 = vrot.slane %v892, 1
    %v894 = vadd.f32 %v892, %v893
    %s895 = vtos %v894
    %896 = vadd.xlane.f32.xlu0 %v886
    %v897 = vpop.xlane.xlu0 %896
    %v898 = vrot.slane %v897, 4
    %v899 = vadd.f32 %v897, %v898
    %v900 = vrot.slane %v899, 2
    %v901 = vadd.f32 %v899, %v900
    %v902 = vrot.slane %v901, 1
    %v903 = vadd.f32 %v901, %v902
    %s904 = vtos %v903
    %s905 = smul.f32 %s895, 0.0009765625
    %s906 = smul.f32 %s904, 0.0009765625
    %s907 = smul.f32 %s905, %s905
    %s908 = ssub.f32 %s906, %s907
    %s909 = smax.f32 %s908, 0.0
    %s910 = smul.f32 %s853, %s852
    %s911 = smul.f32 %s852, %s852
    %s912 = smul.f32 %s911, %s909
    %s913 = sadd.f32 %s912, 1e-05
    %v914 = vstv %s913
    %v915 = vrsqrt.pop %v914
    %s916 = vtos %v915
    %s917 = smul.f32 %s910, %s916
    %s918 = smul.f32 %s917, %s905
    %s919 = ssub.f32 %s854, %s918
    %v920 = vld [vmem:[#allocation8] sm:$0xff]
    %v921 = vld [vmem:[#allocation2] sm:$0xff]
    %v922 = vstv %s917
    %v923 = vmul.f32 %v922, %v921
    %v924 = vadd.f32 %v920, %v923
    %v925 = vstv %s919
    %v926 = vadd.f32 %v924, %v925
    %v927 = vmul.f32 %v926, 0.5
    %v928 = vtanh.pop %v927
    %v929 = vmul.f32 %v928, 0.5
    %v930 = vadd.f32 %v929, 0.5
    %931 = vst [vmem:[#allocation8] sm:$0xff] %v930
    // Predicated region
    $region18: #{tpu_custom_call.1} parent=1 // pred_check
      _
    $region19: #{tpu_custom_call.1} parent=1 // pred_check_branch
      %933 = sbr.rel (0) target = $region21
    $region20: #{tpu_custom_call.1} parent=1 // pred_region
      %s935 = ssub.s32 128, 128
      %936 = vsyncadd [#allocation5], %s935
      %s938 = sshll.u32 [#allocation8], 4
      %s939 = int_to_ptr.vmem [resolvable:$true] %s938
      %941 = dma.vmem_to_hbm [thread:$0]  %s939, 128, %s2, [#allocation5]
    $region21: #{tpu_custom_call.1} parent=1 // pred_fallthru
      _
    // Predicated region
    $region22: #{tpu_custom_call.1} parent=1 // pred_check
      _
    $region23: #{tpu_custom_call.1} parent=1 // pred_check_branch
      %943 = sbr.rel (0) target = $region25
    $region24: #{tpu_custom_call.1} parent=1 // pred_region
      %944 = dma.done [#allocation5], 128
    $region25: #{tpu_custom_call.1} parent=1 // pred_fallthru
      _
    %945 = vsyncpa [#allocation4], 1
    %946 = vsyncpa [#allocation5], 1
    %947 = vsyncpa [#allocation6], 1

</llo_original>
